<compile_context>
chip_gen: v7x
topology: tpu7x:2x2x1
jax: 0.10.0
libtpu: 0.0.40
codegen_flags: <defaults>
</compile_context>

<pallas_src>
import jax
import jax.numpy as jnp
from jax.experimental import pallas as pl
from jax.experimental.pallas import tpu as pltpu

# ---------------- model hyper-parameters (small, consistent with the module) ----
IMG_SIZE = 16
PATCH_SIZE = 4
IN_CHANNELS = 4
EMBED_DIM = 32
NUM_HEADS = 4
NUM_LAYERS = 2
NUM_CLASSES = 10
NUM_PATCHES = (IMG_SIZE // PATCH_SIZE) ** 2          # 16
SEQ_LEN = NUM_PATCHES + 1                            # 17
N_PAD = 24                                           # SEQ_LEN padded to 8-sublane multiple
LN_EPS = 1e-5


# ---------------------------- fused Pallas kernel -------------------------------
def vit_kernel(
    patches_ref,                 # (L*N_PAD, C*ps*ps) f32, zero rows at cls/pad slots
    wp_ref,                      # (C*ps*ps, E) bf16
    add_ref,                     # (L*N_PAD, E) f32: cls+pos_cls | pos_patch+conv_bias | 0
    wqkv_ref, bqkv_ref,          # (NL, E, 3E) bf16, (NL, 1, 3E) f32
    wo_ref, bo_ref,              # (NL, E, E) bf16, (NL, 1, E) f32
    g1_ref, be1_ref,             # (NL, 1, E) norm1
    w1_ref, bf1_ref,             # (NL, E, 4E) bf16, (NL, 1, 4E) f32
    w2_ref, bf2_ref,             # (NL, 4E, E) bf16, (NL, 1, E) f32
    g2_ref, be2_ref,             # (NL, 1, E) norm2
    lng_ref, lnb_ref,            # (1, E) final norm
    sel_ref, selt_ref,           # (E, H) block-diag 0/1, (H, E) its transpose
    o_ref,                       # (L, E) final cls tokens
):
    L, E = o_ref.shape                      # L == 2 (attention length == batch)
    NP = add_ref.shape[0] // L              # padded tokens per image (24)
    H = sel_ref.shape[1]
    hd = E // H
    scale = 1.0 / float(hd) ** 0.5
    num_layers = wqkv_ref.shape[0]

    sel = sel_ref[...]
    selt = selt_ref[...]

    def ln(y, g, b):
        mean = jnp.mean(y, axis=-1, keepdims=True)
        var = jnp.mean(jnp.square(y - mean), axis=-1, keepdims=True)
        return (y - mean) * jax.lax.rsqrt(var + LN_EPS) * g + b

    def bdot(a, w):
        # MXU matmul with bf16 operands, f32 accumulate.
        return jnp.dot(a.astype(w.dtype), w, preferred_element_type=jnp.float32)

    # ---- patch embedding + cls token + positional embedding: ONE aligned matmul ----
    x = bdot(patches_ref[...], wp_ref[...]) + add_ref[...]          # (L*NP, E) f32
    # dropout: identity in eval mode.

    # ---- transformer encoder layers (post-norm, ReLU FFN) ----
    for layer in range(num_layers):
        # fused QKV projection: one matmul over all rows, then static lane slices
        qkv = bdot(x, wqkv_ref[layer]) + bqkv_ref[layer]            # (L*NP, 3E)
        q = qkv[:, 0:E]
        k = qkv[:, E:2 * E]
        v = qkv[:, 2 * E:3 * E]

        # "other image" rows: swap the two aligned NP-row halves (L == 2).
        k_other = jnp.concatenate([k[NP:, :], k[:NP, :]], axis=0)
        v_other = jnp.concatenate([v[NP:, :], v[:NP, :]], axis=0)

        # per-head score difference (own key - other key) via ONE block-diag
        # selection matmul; softmax over the 2 key positions == sigmoid(diff).
        d = jnp.dot(q * (k - k_other), sel,
                    preferred_element_type=jnp.float32) * scale     # (L*NP, H)
        p_own = 1.0 / (1.0 + jnp.exp(-d))                           # (L*NP, H)
        P = jnp.dot(p_own, selt, preferred_element_type=jnp.float32)  # (L*NP, E)

        # value mix + output projection
        attn = v_other + P * (v - v_other)
        attn = bdot(attn, wo_ref[layer]) + bo_ref[layer]

        # post-norm residuals + FFN (hidden slab (L*NP, 128) is exactly lane-dense)
        y = ln(x + attn, g1_ref[layer], be1_ref[layer])
        h = jnp.maximum(bdot(y, w1_ref[layer]) + bf1_ref[layer], 0.0)
        h = bdot(h, w2_ref[layer]) + bf2_ref[layer]
        x = ln(y + h, g2_ref[layer], be2_ref[layer])

    # ---- final LayerNorm on the cls rows (rows l*NP), single (L, E) store ----
    cls_rows = jnp.concatenate([x[l * NP:l * NP + 1, :] for l in range(L)], axis=0)
    o_ref[...] = ln(cls_rows, lng_ref[...], lnb_ref[...])


# ------------------------------ wrapper ------------------------------------------
def manual_vit_forward(x, pp):
    B, C, Himg, Wimg = x.shape
    ps = PATCH_SIZE
    Hp, Wp = Himg // ps, Wimg // ps
    P = Hp * Wp
    E = EMBED_DIM
    K = C * ps * ps
    assert B == 2, "kernel specializes softmax-over-2-keys (batch_first=False quirk, B==2)"

    # patch extraction glue (layout plumbing, outside the kernel):
    # (B,C,H,W) -> (B, P, C*ps*ps), patch order row-major over (h', w'),
    # matching conv-output .flatten(2).transpose(1, 2).
    patches = (
        x.reshape(B, C, Hp, ps, Wp, ps)
        .transpose(0, 2, 4, 1, 3, 5)
        .reshape(B, P, K)
        .astype(jnp.float32)
    )
    # pad to the aligned (B*N_PAD, K) slab: row 0 of each image (cls slot) and
    # rows P+1.. (pad slots) are zero so the patch matmul leaves them untouched.
    patches_padded = (
        jnp.zeros((B, N_PAD, K), jnp.float32)
        .at[:, 1:1 + P, :].set(patches)
        .reshape(B * N_PAD, K)
    )
    add_full = jnp.tile(pp["add_img"], (B, 1))                       # (B*N_PAD, E)

    args = (
        patches_padded, pp["w_patch"], add_full,
        pp["wqkv"], pp["bqkv"], pp["wo"], pp["bo"],
        pp["g1"], pp["be1"], pp["w1"], pp["bf1"], pp["w2"], pp["bf2"],
        pp["g2"], pp["be2"], pp["lng"], pp["lnb"], pp["sel"], pp["selt"],
    )
    return pl.pallas_call(
        vit_kernel,
        out_shape=jax.ShapeDtypeStruct((B, E), jnp.float32),
        in_specs=[pl.BlockSpec(memory_space=pltpu.MemorySpace.VMEM)] * len(args),
        out_specs=pl.BlockSpec(memory_space=pltpu.MemorySpace.VMEM),
    )(*args)


# ------------------------------ parameters ---------------------------------------
def init_params(key):
    """PyTorch-layout parameters (same layout as the nn.Module state_dict)."""
    C, ps, E = IN_CHANNELS, PATCH_SIZE, EMBED_DIM
    keys = jax.random.split(key, 4 + NUM_LAYERS)

    def rand(k, shape, scale=0.02):
        return (scale * jax.random.normal(k, shape)).astype(jnp.float32)

    params = dict(
        w_patch=rand(keys[0], (E, C, ps, ps)),      # Conv2d weight (E, C, ps, ps)
        b_patch=rand(keys[1], (E,)),
        cls_token=rand(keys[2], (1, 1, E)),
        pos_embed=rand(keys[3], (1, NUM_PATCHES + 1, E)),
        ln_g=jnp.ones((E,), jnp.float32),
        ln_b=jnp.zeros((E,), jnp.float32),
        layers=[],
    )
    for i in range(NUM_LAYERS):
        lk = jax.random.split(keys[4 + i], 8)
        params["layers"].append(
            dict(
                in_proj_w=rand(lk[0], (3 * E, E)),
                in_proj_b=rand(lk[1], (3 * E,)),
                out_proj_w=rand(lk[2], (E, E)),
                out_proj_b=rand(lk[3], (E,)),
                ln1_g=jnp.ones((E,), jnp.float32),
                ln1_b=jnp.zeros((E,), jnp.float32),
                w1=rand(lk[4], (4 * E, E)),
                b1=rand(lk[5], (4 * E,)),
                w2=rand(lk[6], (E, 4 * E)),
                b2=rand(lk[7], (E,)),
                ln2_g=jnp.ones((E,), jnp.float32),
                ln2_b=jnp.zeros((E,), jnp.float32),
            )
        )
    return params


def prepare_params(params):
    """One-time prep: transpose / fuse / stack / cast weights so forward does zero reshuffling."""
    C, ps, E, H = IN_CHANNELS, PATCH_SIZE, EMBED_DIM, NUM_HEADS
    P = NUM_PATCHES
    hd = E // H
    wdt = jnp.bfloat16        # matmul-operand dtype for the big MXU matmuls

    def stack(fn, dtype=jnp.float32):
        return jnp.stack([fn(lp) for lp in params["layers"]], axis=0).astype(dtype)

    # block-diagonal 0/1 head-selection matrix (kept f32 for exact reduction/broadcast)
    sel = (jnp.arange(E)[:, None] // hd == jnp.arange(H)[None, :]).astype(jnp.float32)

    # additive slab for one image: cls+pos_cls | pos_patch+conv_bias | zeros (pad rows)
    cls = params["cls_token"].reshape(E)
    pos_cls = params["pos_embed"][0, 0, :]
    pos_patch = params["pos_embed"][0, 1:, :]
    add_img = jnp.zeros((N_PAD, E), jnp.float32)
    add_img = add_img.at[0].set(cls + pos_cls)
    add_img = add_img.at[1:1 + P].set(pos_patch + params["b_patch"][None, :])

    return dict(
        w_patch=params["w_patch"].reshape(E, C * ps * ps).T.astype(wdt),   # (C*ps*ps, E)
        add_img=add_img,                                                   # (N_PAD, E)
        wqkv=stack(lambda lp: lp["in_proj_w"].T, wdt),                     # (NL, E, 3E)
        bqkv=stack(lambda lp: lp["in_proj_b"].reshape(1, 3 * E)),
        wo=stack(lambda lp: lp["out_proj_w"].T, wdt),
        bo=stack(lambda lp: lp["out_proj_b"].reshape(1, E)),
        g1=stack(lambda lp: lp["ln1_g"].reshape(1, E)),
        be1=stack(lambda lp: lp["ln1_b"].reshape(1, E)),
        w1=stack(lambda lp: lp["w1"].T, wdt),                              # (NL, E, 4E)
        bf1=stack(lambda lp: lp["b1"].reshape(1, 4 * E)),
        w2=stack(lambda lp: lp["w2"].T, wdt),                              # (NL, 4E, E)
        bf2=stack(lambda lp: lp["b2"].reshape(1, E)),
        g2=stack(lambda lp: lp["ln2_g"].reshape(1, E)),
        be2=stack(lambda lp: lp["ln2_b"].reshape(1, E)),
        lng=params["ln_g"].reshape(1, E),
        lnb=params["ln_b"].reshape(1, E),
        sel=sel,                                                           # (E, H)
        selt=sel.T,                                                        # (H, E)
    )


if __name__ == "__main__":
    key = jax.random.PRNGKey(0)
    kx, kp = jax.random.split(key)
    x = jax.random.normal(kx, (2, IN_CHANNELS, IMG_SIZE, IMG_SIZE), dtype=jnp.float32)

    params = init_params(kp)
    pp = prepare_params(params)          # weight fusion/transposes/casts hoisted out of forward

    fwd = jax.jit(manual_vit_forward)
    out = jax.block_until_ready(fwd(x, pp))

    assert out.shape == (2, EMBED_DIM), out.shape
    assert bool(jnp.all(jnp.isfinite(out)))
    print("KERNEL_OK")
</pallas_src>

<mosaic_0001>
module attributes {stable_mosaic.version = 11 : i64} {
  func.func @vit_kernel(%arg0: memref<48x64xf32, #tpu.memory_space<vmem>>, %arg1: memref<64x32xbf16, #tpu.memory_space<vmem>>, %arg2: memref<48x32xf32, #tpu.memory_space<vmem>>, %arg3: memref<2x32x96xbf16, #tpu.memory_space<vmem>>, %arg4: memref<2x1x96xf32, #tpu.memory_space<vmem>>, %arg5: memref<2x32x32xbf16, #tpu.memory_space<vmem>>, %arg6: memref<2x1x32xf32, #tpu.memory_space<vmem>>, %arg7: memref<2x1x32xf32, #tpu.memory_space<vmem>>, %arg8: memref<2x1x32xf32, #tpu.memory_space<vmem>>, %arg9: memref<2x32x128xbf16, #tpu.memory_space<vmem>>, %arg10: memref<2x1x128xf32, #tpu.memory_space<vmem>>, %arg11: memref<2x128x32xbf16, #tpu.memory_space<vmem>>, %arg12: memref<2x1x32xf32, #tpu.memory_space<vmem>>, %arg13: memref<2x1x32xf32, #tpu.memory_space<vmem>>, %arg14: memref<2x1x32xf32, #tpu.memory_space<vmem>>, %arg15: memref<1x32xf32, #tpu.memory_space<vmem>>, %arg16: memref<1x32xf32, #tpu.memory_space<vmem>>, %arg17: memref<32x4xf32, #tpu.memory_space<vmem>>, %arg18: memref<4x32xf32, #tpu.memory_space<vmem>>, %arg19: memref<2x32xf32, #tpu.memory_space<vmem>>) attributes {dimension_semantics = [], scalar_prefetch = 0 : i64, scratch_operands = 0 : i64, tpu.core_type = #tpu.core_type<tc>} {
    %c0 = arith.constant 0 : index
    %c0_0 = arith.constant 0 : index
    %0 = vector.load %arg17[%c0, %c0_0] : memref<32x4xf32, #tpu.memory_space<vmem>>, vector<32x4xf32>
    %c0_1 = arith.constant 0 : index
    %c0_2 = arith.constant 0 : index
    %1 = vector.load %arg18[%c0_1, %c0_2] : memref<4x32xf32, #tpu.memory_space<vmem>>, vector<4x32xf32>
    %c0_3 = arith.constant 0 : index
    %c0_4 = arith.constant 0 : index
    %2 = vector.load %arg0[%c0_3, %c0_4] : memref<48x64xf32, #tpu.memory_space<vmem>>, vector<48x64xf32>
    %c0_5 = arith.constant 0 : index
    %c0_6 = arith.constant 0 : index
    %3 = vector.load %arg1[%c0_5, %c0_6] : memref<64x32xbf16, #tpu.memory_space<vmem>>, vector<64x32xbf16>
    %4 = arith.truncf %2 : vector<48x64xf32> to vector<48x64xbf16>
    %cst = arith.constant dense<0.000000e+00> : vector<48x32xf32>
    %5 = tpu.matmul %4, %3, %cst {dimension_numbers = #tpu.dot_dimension_numbers<[1], [0], [0], [1], [0, 0, 1, 1], [], []>} : vector<48x64xbf16>, vector<64x32xbf16>, vector<48x32xf32> -> vector<48x32xf32>
    %c0_7 = arith.constant 0 : index
    %c0_8 = arith.constant 0 : index
    %6 = vector.load %arg2[%c0_7, %c0_8] : memref<48x32xf32, #tpu.memory_space<vmem>>, vector<48x32xf32>
    %7 = arith.addf %5, %6 : vector<48x32xf32>
    %c0_9 = arith.constant 0 : index
    %c0_10 = arith.constant 0 : index
    %c0_11 = arith.constant 0 : index
    %8 = vector.load %arg3[%c0_9, %c0_10, %c0_11] : memref<2x32x96xbf16, #tpu.memory_space<vmem>>, vector<1x32x96xbf16>
    %9 = vector.shape_cast %8 : vector<1x32x96xbf16> to vector<32x96xbf16>
    %10 = arith.truncf %7 : vector<48x32xf32> to vector<48x32xbf16>
    %cst_12 = arith.constant dense<0.000000e+00> : vector<48x96xf32>
    %11 = tpu.matmul %10, %9, %cst_12 {dimension_numbers = #tpu.dot_dimension_numbers<[1], [0], [0], [1], [0, 0, 1, 1], [], []>} : vector<48x32xbf16>, vector<32x96xbf16>, vector<48x96xf32> -> vector<48x96xf32>
    %c0_13 = arith.constant 0 : index
    %c0_14 = arith.constant 0 : index
    %c0_15 = arith.constant 0 : index
    %12 = vector.load %arg4[%c0_13, %c0_14, %c0_15] : memref<2x1x96xf32, #tpu.memory_space<vmem>>, vector<1x1x96xf32>
    %13 = vector.shape_cast %12 : vector<1x1x96xf32> to vector<1x96xf32>
    %14 = vector.broadcast %13 : vector<1x96xf32> to vector<48x96xf32>
    %15 = arith.addf %11, %14 : vector<48x96xf32>
    %16 = vector.extract_strided_slice %15 {offsets = [0, 0], sizes = [48, 32], strides = [1, 1]} : vector<48x96xf32> to vector<48x32xf32>
    %17 = vector.extract_strided_slice %15 {offsets = [0, 32], sizes = [48, 32], strides = [1, 1]} : vector<48x96xf32> to vector<48x32xf32>
    %18 = vector.extract_strided_slice %15 {offsets = [0, 64], sizes = [48, 32], strides = [1, 1]} : vector<48x96xf32> to vector<48x32xf32>
    %19 = vector.extract_strided_slice %17 {offsets = [24, 0], sizes = [24, 32], strides = [1, 1]} : vector<48x32xf32> to vector<24x32xf32>
    %20 = vector.extract_strided_slice %17 {offsets = [0, 0], sizes = [24, 32], strides = [1, 1]} : vector<48x32xf32> to vector<24x32xf32>
    %21 = tpu.concatenate %19, %20 in 0 : vector<24x32xf32>, vector<24x32xf32> -> vector<48x32xf32>
    %22 = vector.extract_strided_slice %18 {offsets = [24, 0], sizes = [24, 32], strides = [1, 1]} : vector<48x32xf32> to vector<24x32xf32>
    %23 = vector.extract_strided_slice %18 {offsets = [0, 0], sizes = [24, 32], strides = [1, 1]} : vector<48x32xf32> to vector<24x32xf32>
    %24 = tpu.concatenate %22, %23 in 0 : vector<24x32xf32>, vector<24x32xf32> -> vector<48x32xf32>
    %25 = arith.subf %17, %21 : vector<48x32xf32>
    %26 = arith.mulf %16, %25 : vector<48x32xf32>
    %cst_16 = arith.constant dense<0.000000e+00> : vector<48x4xf32>
    %27 = tpu.matmul %26, %0, %cst_16 {dimension_numbers = #tpu.dot_dimension_numbers<[1], [0], [0], [1], [0, 0, 1, 1], [], []>} : vector<48x32xf32>, vector<32x4xf32>, vector<48x4xf32> -> vector<48x4xf32>
    %cst_17 = arith.constant 0.353553385 : f32
    %28 = vector.broadcast %cst_17 : f32 to vector<48x4xf32>
    %29 = arith.mulf %27, %28 : vector<48x4xf32>
    %cst_18 = arith.constant 0.000000e+00 : f32
    %30 = vector.broadcast %cst_18 : f32 to vector<48x4xf32>
    %31 = arith.subf %30, %29 : vector<48x4xf32>
    %32 = math.exp %31 : vector<48x4xf32>
    %cst_19 = arith.constant 1.000000e+00 : f32
    %33 = vector.broadcast %cst_19 : f32 to vector<48x4xf32>
    %34 = arith.addf %33, %32 : vector<48x4xf32>
    %cst_20 = arith.constant 1.000000e+00 : f32
    %35 = vector.broadcast %cst_20 : f32 to vector<48x4xf32>
    %36 = arith.divf %35, %34 : vector<48x4xf32>
    %cst_21 = arith.constant dense<0.000000e+00> : vector<48x32xf32>
    %37 = tpu.matmul %36, %1, %cst_21 {dimension_numbers = #tpu.dot_dimension_numbers<[1], [0], [0], [1], [0, 0, 1, 1], [], []>} : vector<48x4xf32>, vector<4x32xf32>, vector<48x32xf32> -> vector<48x32xf32>
    %38 = arith.subf %18, %24 : vector<48x32xf32>
    %39 = arith.mulf %37, %38 : vector<48x32xf32>
    %40 = arith.addf %24, %39 : vector<48x32xf32>
    %c0_22 = arith.constant 0 : index
    %c0_23 = arith.constant 0 : index
    %c0_24 = arith.constant 0 : index
    %41 = vector.load %arg5[%c0_22, %c0_23, %c0_24] : memref<2x32x32xbf16, #tpu.memory_space<vmem>>, vector<1x32x32xbf16>
    %42 = vector.shape_cast %41 : vector<1x32x32xbf16> to vector<32x32xbf16>
    %43 = arith.truncf %40 : vector<48x32xf32> to vector<48x32xbf16>
    %cst_25 = arith.constant dense<0.000000e+00> : vector<48x32xf32>
    %44 = tpu.matmul %43, %42, %cst_25 {dimension_numbers = #tpu.dot_dimension_numbers<[1], [0], [0], [1], [0, 0, 1, 1], [], []>} : vector<48x32xbf16>, vector<32x32xbf16>, vector<48x32xf32> -> vector<48x32xf32>
    %c0_26 = arith.constant 0 : index
    %c0_27 = arith.constant 0 : index
    %c0_28 = arith.constant 0 : index
    %45 = vector.load %arg6[%c0_26, %c0_27, %c0_28] : memref<2x1x32xf32, #tpu.memory_space<vmem>>, vector<1x1x32xf32>
    %46 = vector.shape_cast %45 : vector<1x1x32xf32> to vector<1x32xf32>
    %47 = vector.broadcast %46 : vector<1x32xf32> to vector<48x32xf32>
    %48 = arith.addf %44, %47 : vector<48x32xf32>
    %49 = arith.addf %7, %48 : vector<48x32xf32>
    %c0_29 = arith.constant 0 : index
    %c0_30 = arith.constant 0 : index
    %c0_31 = arith.constant 0 : index
    %50 = vector.load %arg7[%c0_29, %c0_30, %c0_31] : memref<2x1x32xf32, #tpu.memory_space<vmem>>, vector<1x1x32xf32>
    %51 = vector.shape_cast %50 : vector<1x1x32xf32> to vector<1x32xf32>
    %c0_32 = arith.constant 0 : index
    %c0_33 = arith.constant 0 : index
    %c0_34 = arith.constant 0 : index
    %52 = vector.load %arg8[%c0_32, %c0_33, %c0_34] : memref<2x1x32xf32, #tpu.memory_space<vmem>>, vector<1x1x32xf32>
    %53 = vector.shape_cast %52 : vector<1x1x32xf32> to vector<1x32xf32>
    %cst_35 = arith.constant dense<0.000000e+00> : vector<48xf32>
    %54 = vector.multi_reduction <add>, %49, %cst_35 [1] : vector<48x32xf32> to vector<48xf32>
    %55 = vector.shape_cast %54 : vector<48xf32> to vector<48x1xf32>
    %cst_36 = arith.constant 3.200000e+01 : f32
    %56 = vector.broadcast %cst_36 : f32 to vector<48x1xf32>
    %57 = arith.divf %55, %56 : vector<48x1xf32>
    %58 = vector.broadcast %57 : vector<48x1xf32> to vector<48x32xf32>
    %59 = arith.subf %49, %58 : vector<48x32xf32>
    %60 = arith.mulf %59, %59 : vector<48x32xf32>
    %cst_37 = arith.constant dense<0.000000e+00> : vector<48xf32>
    %61 = vector.multi_reduction <add>, %60, %cst_37 [1] : vector<48x32xf32> to vector<48xf32>
    %62 = vector.shape_cast %61 : vector<48xf32> to vector<48x1xf32>
    %cst_38 = arith.constant 3.200000e+01 : f32
    %63 = vector.broadcast %cst_38 : f32 to vector<48x1xf32>
    %64 = arith.divf %62, %63 : vector<48x1xf32>
    %65 = vector.broadcast %57 : vector<48x1xf32> to vector<48x32xf32>
    %66 = arith.subf %49, %65 : vector<48x32xf32>
    %cst_39 = arith.constant 9.99999974E-6 : f32
    %67 = vector.broadcast %cst_39 : f32 to vector<48x1xf32>
    %68 = arith.addf %64, %67 : vector<48x1xf32>
    %69 = math.rsqrt %68 : vector<48x1xf32>
    %70 = vector.broadcast %69 : vector<48x1xf32> to vector<48x32xf32>
    %71 = arith.mulf %66, %70 : vector<48x32xf32>
    %72 = vector.broadcast %51 : vector<1x32xf32> to vector<48x32xf32>
    %73 = arith.mulf %71, %72 : vector<48x32xf32>
    %74 = vector.broadcast %53 : vector<1x32xf32> to vector<48x32xf32>
    %75 = arith.addf %73, %74 : vector<48x32xf32>
    %c0_40 = arith.constant 0 : index
    %c0_41 = arith.constant 0 : index
    %c0_42 = arith.constant 0 : index
    %76 = vector.load %arg9[%c0_40, %c0_41, %c0_42] : memref<2x32x128xbf16, #tpu.memory_space<vmem>>, vector<1x32x128xbf16>
    %77 = vector.shape_cast %76 : vector<1x32x128xbf16> to vector<32x128xbf16>
    %78 = arith.truncf %75 : vector<48x32xf32> to vector<48x32xbf16>
    %cst_43 = arith.constant dense<0.000000e+00> : vector<48x128xf32>
    %79 = tpu.matmul %78, %77, %cst_43 {dimension_numbers = #tpu.dot_dimension_numbers<[1], [0], [0], [1], [0, 0, 1, 1], [], []>} : vector<48x32xbf16>, vector<32x128xbf16>, vector<48x128xf32> -> vector<48x128xf32>
    %c0_44 = arith.constant 0 : index
    %c0_45 = arith.constant 0 : index
    %c0_46 = arith.constant 0 : index
    %80 = vector.load %arg10[%c0_44, %c0_45, %c0_46] : memref<2x1x128xf32, #tpu.memory_space<vmem>>, vector<1x1x128xf32>
    %81 = vector.shape_cast %80 : vector<1x1x128xf32> to vector<1x128xf32>
    %82 = vector.broadcast %81 : vector<1x128xf32> to vector<48x128xf32>
    %83 = arith.addf %79, %82 : vector<48x128xf32>
    %cst_47 = arith.constant 0.000000e+00 : f32
    %84 = vector.broadcast %cst_47 : f32 to vector<48x128xf32>
    %85 = arith.maximumf %83, %84 : vector<48x128xf32>
    %c0_48 = arith.constant 0 : index
    %c0_49 = arith.constant 0 : index
    %c0_50 = arith.constant 0 : index
    %86 = vector.load %arg11[%c0_48, %c0_49, %c0_50] : memref<2x128x32xbf16, #tpu.memory_space<vmem>>, vector<1x128x32xbf16>
    %87 = vector.shape_cast %86 : vector<1x128x32xbf16> to vector<128x32xbf16>
    %88 = arith.truncf %85 : vector<48x128xf32> to vector<48x128xbf16>
    %cst_51 = arith.constant dense<0.000000e+00> : vector<48x32xf32>
    %89 = tpu.matmul %88, %87, %cst_51 {dimension_numbers = #tpu.dot_dimension_numbers<[1], [0], [0], [1], [0, 0, 1, 1], [], []>} : vector<48x128xbf16>, vector<128x32xbf16>, vector<48x32xf32> -> vector<48x32xf32>
    %c0_52 = arith.constant 0 : index
    %c0_53 = arith.constant 0 : index
    %c0_54 = arith.constant 0 : index
    %90 = vector.load %arg12[%c0_52, %c0_53, %c0_54] : memref<2x1x32xf32, #tpu.memory_space<vmem>>, vector<1x1x32xf32>
    %91 = vector.shape_cast %90 : vector<1x1x32xf32> to vector<1x32xf32>
    %92 = vector.broadcast %91 : vector<1x32xf32> to vector<48x32xf32>
    %93 = arith.addf %89, %92 : vector<48x32xf32>
    %94 = arith.addf %75, %93 : vector<48x32xf32>
    %c0_55 = arith.constant 0 : index
    %c0_56 = arith.constant 0 : index
    %c0_57 = arith.constant 0 : index
    %95 = vector.load %arg13[%c0_55, %c0_56, %c0_57] : memref<2x1x32xf32, #tpu.memory_space<vmem>>, vector<1x1x32xf32>
    %96 = vector.shape_cast %95 : vector<1x1x32xf32> to vector<1x32xf32>
    %c0_58 = arith.constant 0 : index
    %c0_59 = arith.constant 0 : index
    %c0_60 = arith.constant 0 : index
    %97 = vector.load %arg14[%c0_58, %c0_59, %c0_60] : memref<2x1x32xf32, #tpu.memory_space<vmem>>, vector<1x1x32xf32>
    %98 = vector.shape_cast %97 : vector<1x1x32xf32> to vector<1x32xf32>
    %cst_61 = arith.constant dense<0.000000e+00> : vector<48xf32>
    %99 = vector.multi_reduction <add>, %94, %cst_61 [1] : vector<48x32xf32> to vector<48xf32>
    %100 = vector.shape_cast %99 : vector<48xf32> to vector<48x1xf32>
    %cst_62 = arith.constant 3.200000e+01 : f32
    %101 = vector.broadcast %cst_62 : f32 to vector<48x1xf32>
    %102 = arith.divf %100, %101 : vector<48x1xf32>
    %103 = vector.broadcast %102 : vector<48x1xf32> to vector<48x32xf32>
    %104 = arith.subf %94, %103 : vector<48x32xf32>
    %105 = arith.mulf %104, %104 : vector<48x32xf32>
    %cst_63 = arith.constant dense<0.000000e+00> : vector<48xf32>
    %106 = vector.multi_reduction <add>, %105, %cst_63 [1] : vector<48x32xf32> to vector<48xf32>
    %107 = vector.shape_cast %106 : vector<48xf32> to vector<48x1xf32>
    %cst_64 = arith.constant 3.200000e+01 : f32
    %108 = vector.broadcast %cst_64 : f32 to vector<48x1xf32>
    %109 = arith.divf %107, %108 : vector<48x1xf32>
    %110 = vector.broadcast %102 : vector<48x1xf32> to vector<48x32xf32>
    %111 = arith.subf %94, %110 : vector<48x32xf32>
    %cst_65 = arith.constant 9.99999974E-6 : f32
    %112 = vector.broadcast %cst_65 : f32 to vector<48x1xf32>
    %113 = arith.addf %109, %112 : vector<48x1xf32>
    %114 = math.rsqrt %113 : vector<48x1xf32>
    %115 = vector.broadcast %114 : vector<48x1xf32> to vector<48x32xf32>
    %116 = arith.mulf %111, %115 : vector<48x32xf32>
    %117 = vector.broadcast %96 : vector<1x32xf32> to vector<48x32xf32>
    %118 = arith.mulf %116, %117 : vector<48x32xf32>
    %119 = vector.broadcast %98 : vector<1x32xf32> to vector<48x32xf32>
    %120 = arith.addf %118, %119 : vector<48x32xf32>
    %c1 = arith.constant 1 : index
    %c0_66 = arith.constant 0 : index
    %c0_67 = arith.constant 0 : index
    %121 = vector.load %arg3[%c1, %c0_66, %c0_67] : memref<2x32x96xbf16, #tpu.memory_space<vmem>>, vector<1x32x96xbf16>
    %122 = vector.shape_cast %121 : vector<1x32x96xbf16> to vector<32x96xbf16>
    %123 = arith.truncf %120 : vector<48x32xf32> to vector<48x32xbf16>
    %cst_68 = arith.constant dense<0.000000e+00> : vector<48x96xf32>
    %124 = tpu.matmul %123, %122, %cst_68 {dimension_numbers = #tpu.dot_dimension_numbers<[1], [0], [0], [1], [0, 0, 1, 1], [], []>} : vector<48x32xbf16>, vector<32x96xbf16>, vector<48x96xf32> -> vector<48x96xf32>
    %c1_69 = arith.constant 1 : index
    %c0_70 = arith.constant 0 : index
    %c0_71 = arith.constant 0 : index
    %125 = vector.load %arg4[%c1_69, %c0_70, %c0_71] : memref<2x1x96xf32, #tpu.memory_space<vmem>>, vector<1x1x96xf32>
    %126 = vector.shape_cast %125 : vector<1x1x96xf32> to vector<1x96xf32>
    %127 = vector.broadcast %126 : vector<1x96xf32> to vector<48x96xf32>
    %128 = arith.addf %124, %127 : vector<48x96xf32>
    %129 = vector.extract_strided_slice %128 {offsets = [0, 0], sizes = [48, 32], strides = [1, 1]} : vector<48x96xf32> to vector<48x32xf32>
    %130 = vector.extract_strided_slice %128 {offsets = [0, 32], sizes = [48, 32], strides = [1, 1]} : vector<48x96xf32> to vector<48x32xf32>
    %131 = vector.extract_strided_slice %128 {offsets = [0, 64], sizes = [48, 32], strides = [1, 1]} : vector<48x96xf32> to vector<48x32xf32>
    %132 = vector.extract_strided_slice %130 {offsets = [24, 0], sizes = [24, 32], strides = [1, 1]} : vector<48x32xf32> to vector<24x32xf32>
    %133 = vector.extract_strided_slice %130 {offsets = [0, 0], sizes = [24, 32], strides = [1, 1]} : vector<48x32xf32> to vector<24x32xf32>
    %134 = tpu.concatenate %132, %133 in 0 : vector<24x32xf32>, vector<24x32xf32> -> vector<48x32xf32>
    %135 = vector.extract_strided_slice %131 {offsets = [24, 0], sizes = [24, 32], strides = [1, 1]} : vector<48x32xf32> to vector<24x32xf32>
    %136 = vector.extract_strided_slice %131 {offsets = [0, 0], sizes = [24, 32], strides = [1, 1]} : vector<48x32xf32> to vector<24x32xf32>
    %137 = tpu.concatenate %135, %136 in 0 : vector<24x32xf32>, vector<24x32xf32> -> vector<48x32xf32>
    %138 = arith.subf %130, %134 : vector<48x32xf32>
    %139 = arith.mulf %129, %138 : vector<48x32xf32>
    %cst_72 = arith.constant dense<0.000000e+00> : vector<48x4xf32>
    %140 = tpu.matmul %139, %0, %cst_72 {dimension_numbers = #tpu.dot_dimension_numbers<[1], [0], [0], [1], [0, 0, 1, 1], [], []>} : vector<48x32xf32>, vector<32x4xf32>, vector<48x4xf32> -> vector<48x4xf32>
    %cst_73 = arith.constant 0.353553385 : f32
    %141 = vector.broadcast %cst_73 : f32 to vector<48x4xf32>
    %142 = arith.mulf %140, %141 : vector<48x4xf32>
    %cst_74 = arith.constant 0.000000e+00 : f32
    %143 = vector.broadcast %cst_74 : f32 to vector<48x4xf32>
    %144 = arith.subf %143, %142 : vector<48x4xf32>
    %145 = math.exp %144 : vector<48x4xf32>
    %cst_75 = arith.constant 1.000000e+00 : f32
    %146 = vector.broadcast %cst_75 : f32 to vector<48x4xf32>
    %147 = arith.addf %146, %145 : vector<48x4xf32>
    %cst_76 = arith.constant 1.000000e+00 : f32
    %148 = vector.broadcast %cst_76 : f32 to vector<48x4xf32>
    %149 = arith.divf %148, %147 : vector<48x4xf32>
    %cst_77 = arith.constant dense<0.000000e+00> : vector<48x32xf32>
    %150 = tpu.matmul %149, %1, %cst_77 {dimension_numbers = #tpu.dot_dimension_numbers<[1], [0], [0], [1], [0, 0, 1, 1], [], []>} : vector<48x4xf32>, vector<4x32xf32>, vector<48x32xf32> -> vector<48x32xf32>
    %151 = arith.subf %131, %137 : vector<48x32xf32>
    %152 = arith.mulf %150, %151 : vector<48x32xf32>
    %153 = arith.addf %137, %152 : vector<48x32xf32>
    %c1_78 = arith.constant 1 : index
    %c0_79 = arith.constant 0 : index
    %c0_80 = arith.constant 0 : index
    %154 = vector.load %arg5[%c1_78, %c0_79, %c0_80] : memref<2x32x32xbf16, #tpu.memory_space<vmem>>, vector<1x32x32xbf16>
    %155 = vector.shape_cast %154 : vector<1x32x32xbf16> to vector<32x32xbf16>
    %156 = arith.truncf %153 : vector<48x32xf32> to vector<48x32xbf16>
    %cst_81 = arith.constant dense<0.000000e+00> : vector<48x32xf32>
    %157 = tpu.matmul %156, %155, %cst_81 {dimension_numbers = #tpu.dot_dimension_numbers<[1], [0], [0], [1], [0, 0, 1, 1], [], []>} : vector<48x32xbf16>, vector<32x32xbf16>, vector<48x32xf32> -> vector<48x32xf32>
    %c1_82 = arith.constant 1 : index
    %c0_83 = arith.constant 0 : index
    %c0_84 = arith.constant 0 : index
    %158 = vector.load %arg6[%c1_82, %c0_83, %c0_84] : memref<2x1x32xf32, #tpu.memory_space<vmem>>, vector<1x1x32xf32>
    %159 = vector.shape_cast %158 : vector<1x1x32xf32> to vector<1x32xf32>
    %160 = vector.broadcast %159 : vector<1x32xf32> to vector<48x32xf32>
    %161 = arith.addf %157, %160 : vector<48x32xf32>
    %162 = arith.addf %120, %161 : vector<48x32xf32>
    %c1_85 = arith.constant 1 : index
    %c0_86 = arith.constant 0 : index
    %c0_87 = arith.constant 0 : index
    %163 = vector.load %arg7[%c1_85, %c0_86, %c0_87] : memref<2x1x32xf32, #tpu.memory_space<vmem>>, vector<1x1x32xf32>
    %164 = vector.shape_cast %163 : vector<1x1x32xf32> to vector<1x32xf32>
    %c1_88 = arith.constant 1 : index
    %c0_89 = arith.constant 0 : index
    %c0_90 = arith.constant 0 : index
    %165 = vector.load %arg8[%c1_88, %c0_89, %c0_90] : memref<2x1x32xf32, #tpu.memory_space<vmem>>, vector<1x1x32xf32>
    %166 = vector.shape_cast %165 : vector<1x1x32xf32> to vector<1x32xf32>
    %cst_91 = arith.constant dense<0.000000e+00> : vector<48xf32>
    %167 = vector.multi_reduction <add>, %162, %cst_91 [1] : vector<48x32xf32> to vector<48xf32>
    %168 = vector.shape_cast %167 : vector<48xf32> to vector<48x1xf32>
    %cst_92 = arith.constant 3.200000e+01 : f32
    %169 = vector.broadcast %cst_92 : f32 to vector<48x1xf32>
    %170 = arith.divf %168, %169 : vector<48x1xf32>
    %171 = vector.broadcast %170 : vector<48x1xf32> to vector<48x32xf32>
    %172 = arith.subf %162, %171 : vector<48x32xf32>
    %173 = arith.mulf %172, %172 : vector<48x32xf32>
    %cst_93 = arith.constant dense<0.000000e+00> : vector<48xf32>
    %174 = vector.multi_reduction <add>, %173, %cst_93 [1] : vector<48x32xf32> to vector<48xf32>
    %175 = vector.shape_cast %174 : vector<48xf32> to vector<48x1xf32>
    %cst_94 = arith.constant 3.200000e+01 : f32
    %176 = vector.broadcast %cst_94 : f32 to vector<48x1xf32>
    %177 = arith.divf %175, %176 : vector<48x1xf32>
    %178 = vector.broadcast %170 : vector<48x1xf32> to vector<48x32xf32>
    %179 = arith.subf %162, %178 : vector<48x32xf32>
    %cst_95 = arith.constant 9.99999974E-6 : f32
    %180 = vector.broadcast %cst_95 : f32 to vector<48x1xf32>
    %181 = arith.addf %177, %180 : vector<48x1xf32>
    %182 = math.rsqrt %181 : vector<48x1xf32>
    %183 = vector.broadcast %182 : vector<48x1xf32> to vector<48x32xf32>
    %184 = arith.mulf %179, %183 : vector<48x32xf32>
    %185 = vector.broadcast %164 : vector<1x32xf32> to vector<48x32xf32>
    %186 = arith.mulf %184, %185 : vector<48x32xf32>
    %187 = vector.broadcast %166 : vector<1x32xf32> to vector<48x32xf32>
    %188 = arith.addf %186, %187 : vector<48x32xf32>
    %c1_96 = arith.constant 1 : index
    %c0_97 = arith.constant 0 : index
    %c0_98 = arith.constant 0 : index
    %189 = vector.load %arg9[%c1_96, %c0_97, %c0_98] : memref<2x32x128xbf16, #tpu.memory_space<vmem>>, vector<1x32x128xbf16>
    %190 = vector.shape_cast %189 : vector<1x32x128xbf16> to vector<32x128xbf16>
    %191 = arith.truncf %188 : vector<48x32xf32> to vector<48x32xbf16>
    %cst_99 = arith.constant dense<0.000000e+00> : vector<48x128xf32>
    %192 = tpu.matmul %191, %190, %cst_99 {dimension_numbers = #tpu.dot_dimension_numbers<[1], [0], [0], [1], [0, 0, 1, 1], [], []>} : vector<48x32xbf16>, vector<32x128xbf16>, vector<48x128xf32> -> vector<48x128xf32>
    %c1_100 = arith.constant 1 : index
    %c0_101 = arith.constant 0 : index
    %c0_102 = arith.constant 0 : index
    %193 = vector.load %arg10[%c1_100, %c0_101, %c0_102] : memref<2x1x128xf32, #tpu.memory_space<vmem>>, vector<1x1x128xf32>
    %194 = vector.shape_cast %193 : vector<1x1x128xf32> to vector<1x128xf32>
    %195 = vector.broadcast %194 : vector<1x128xf32> to vector<48x128xf32>
    %196 = arith.addf %192, %195 : vector<48x128xf32>
    %cst_103 = arith.constant 0.000000e+00 : f32
    %197 = vector.broadcast %cst_103 : f32 to vector<48x128xf32>
    %198 = arith.maximumf %196, %197 : vector<48x128xf32>
    %c1_104 = arith.constant 1 : index
    %c0_105 = arith.constant 0 : index
    %c0_106 = arith.constant 0 : index
    %199 = vector.load %arg11[%c1_104, %c0_105, %c0_106] : memref<2x128x32xbf16, #tpu.memory_space<vmem>>, vector<1x128x32xbf16>
    %200 = vector.shape_cast %199 : vector<1x128x32xbf16> to vector<128x32xbf16>
    %201 = arith.truncf %198 : vector<48x128xf32> to vector<48x128xbf16>
    %cst_107 = arith.constant dense<0.000000e+00> : vector<48x32xf32>
    %202 = tpu.matmul %201, %200, %cst_107 {dimension_numbers = #tpu.dot_dimension_numbers<[1], [0], [0], [1], [0, 0, 1, 1], [], []>} : vector<48x128xbf16>, vector<128x32xbf16>, vector<48x32xf32> -> vector<48x32xf32>
    %c1_108 = arith.constant 1 : index
    %c0_109 = arith.constant 0 : index
    %c0_110 = arith.constant 0 : index
    %203 = vector.load %arg12[%c1_108, %c0_109, %c0_110] : memref<2x1x32xf32, #tpu.memory_space<vmem>>, vector<1x1x32xf32>
    %204 = vector.shape_cast %203 : vector<1x1x32xf32> to vector<1x32xf32>
    %205 = vector.broadcast %204 : vector<1x32xf32> to vector<48x32xf32>
    %206 = arith.addf %202, %205 : vector<48x32xf32>
    %207 = arith.addf %188, %206 : vector<48x32xf32>
    %c1_111 = arith.constant 1 : index
    %c0_112 = arith.constant 0 : index
    %c0_113 = arith.constant 0 : index
    %208 = vector.load %arg13[%c1_111, %c0_112, %c0_113] : memref<2x1x32xf32, #tpu.memory_space<vmem>>, vector<1x1x32xf32>
    %209 = vector.shape_cast %208 : vector<1x1x32xf32> to vector<1x32xf32>
    %c1_114 = arith.constant 1 : index
    %c0_115 = arith.constant 0 : index
    %c0_116 = arith.constant 0 : index
    %210 = vector.load %arg14[%c1_114, %c0_115, %c0_116] : memref<2x1x32xf32, #tpu.memory_space<vmem>>, vector<1x1x32xf32>
    %211 = vector.shape_cast %210 : vector<1x1x32xf32> to vector<1x32xf32>
    %cst_117 = arith.constant dense<0.000000e+00> : vector<48xf32>
    %212 = vector.multi_reduction <add>, %207, %cst_117 [1] : vector<48x32xf32> to vector<48xf32>
    %213 = vector.shape_cast %212 : vector<48xf32> to vector<48x1xf32>
    %cst_118 = arith.constant 3.200000e+01 : f32
    %214 = vector.broadcast %cst_118 : f32 to vector<48x1xf32>
    %215 = arith.divf %213, %214 : vector<48x1xf32>
    %216 = vector.broadcast %215 : vector<48x1xf32> to vector<48x32xf32>
    %217 = arith.subf %207, %216 : vector<48x32xf32>
    %218 = arith.mulf %217, %217 : vector<48x32xf32>
    %cst_119 = arith.constant dense<0.000000e+00> : vector<48xf32>
    %219 = vector.multi_reduction <add>, %218, %cst_119 [1] : vector<48x32xf32> to vector<48xf32>
    %220 = vector.shape_cast %219 : vector<48xf32> to vector<48x1xf32>
    %cst_120 = arith.constant 3.200000e+01 : f32
    %221 = vector.broadcast %cst_120 : f32 to vector<48x1xf32>
    %222 = arith.divf %220, %221 : vector<48x1xf32>
    %223 = vector.broadcast %215 : vector<48x1xf32> to vector<48x32xf32>
    %224 = arith.subf %207, %223 : vector<48x32xf32>
    %cst_121 = arith.constant 9.99999974E-6 : f32
    %225 = vector.broadcast %cst_121 : f32 to vector<48x1xf32>
    %226 = arith.addf %222, %225 : vector<48x1xf32>
    %227 = math.rsqrt %226 : vector<48x1xf32>
    %228 = vector.broadcast %227 : vector<48x1xf32> to vector<48x32xf32>
    %229 = arith.mulf %224, %228 : vector<48x32xf32>
    %230 = vector.broadcast %209 : vector<1x32xf32> to vector<48x32xf32>
    %231 = arith.mulf %229, %230 : vector<48x32xf32>
    %232 = vector.broadcast %211 : vector<1x32xf32> to vector<48x32xf32>
    %233 = arith.addf %231, %232 : vector<48x32xf32>
    %234 = vector.extract_strided_slice %233 {offsets = [0, 0], sizes = [1, 32], strides = [1, 1]} : vector<48x32xf32> to vector<1x32xf32>
    %235 = vector.extract_strided_slice %233 {offsets = [24, 0], sizes = [1, 32], strides = [1, 1]} : vector<48x32xf32> to vector<1x32xf32>
    %236 = tpu.concatenate %234, %235 in 0 : vector<1x32xf32>, vector<1x32xf32> -> vector<2x32xf32>
    %c0_122 = arith.constant 0 : index
    %c0_123 = arith.constant 0 : index
    %237 = vector.load %arg15[%c0_122, %c0_123] : memref<1x32xf32, #tpu.memory_space<vmem>>, vector<1x32xf32>
    %c0_124 = arith.constant 0 : index
    %c0_125 = arith.constant 0 : index
    %238 = vector.load %arg16[%c0_124, %c0_125] : memref<1x32xf32, #tpu.memory_space<vmem>>, vector<1x32xf32>
    %cst_126 = arith.constant dense<0.000000e+00> : vector<2xf32>
    %239 = vector.multi_reduction <add>, %236, %cst_126 [1] : vector<2x32xf32> to vector<2xf32>
    %240 = vector.shape_cast %239 : vector<2xf32> to vector<2x1xf32>
    %cst_127 = arith.constant 3.200000e+01 : f32
    %241 = vector.broadcast %cst_127 : f32 to vector<2x1xf32>
    %242 = arith.divf %240, %241 : vector<2x1xf32>
    %243 = vector.broadcast %242 : vector<2x1xf32> to vector<2x32xf32>
    %244 = arith.subf %236, %243 : vector<2x32xf32>
    %245 = arith.mulf %244, %244 : vector<2x32xf32>
    %cst_128 = arith.constant dense<0.000000e+00> : vector<2xf32>
    %246 = vector.multi_reduction <add>, %245, %cst_128 [1] : vector<2x32xf32> to vector<2xf32>
    %247 = vector.shape_cast %246 : vector<2xf32> to vector<2x1xf32>
    %cst_129 = arith.constant 3.200000e+01 : f32
    %248 = vector.broadcast %cst_129 : f32 to vector<2x1xf32>
    %249 = arith.divf %247, %248 : vector<2x1xf32>
    %250 = vector.broadcast %242 : vector<2x1xf32> to vector<2x32xf32>
    %251 = arith.subf %236, %250 : vector<2x32xf32>
    %cst_130 = arith.constant 9.99999974E-6 : f32
    %252 = vector.broadcast %cst_130 : f32 to vector<2x1xf32>
    %253 = arith.addf %249, %252 : vector<2x1xf32>
    %254 = math.rsqrt %253 : vector<2x1xf32>
    %255 = vector.broadcast %254 : vector<2x1xf32> to vector<2x32xf32>
    %256 = arith.mulf %251, %255 : vector<2x32xf32>
    %257 = vector.broadcast %237 : vector<1x32xf32> to vector<2x32xf32>
    %258 = arith.mulf %256, %257 : vector<2x32xf32>
    %259 = vector.broadcast %238 : vector<1x32xf32> to vector<2x32xf32>
    %260 = arith.addf %258, %259 : vector<2x32xf32>
    %c0_131 = arith.constant 0 : index
    %c0_132 = arith.constant 0 : index
    %261 = vector.load %arg19[%c0_131, %c0_132] : memref<2x32xf32, #tpu.memory_space<vmem>>, vector<2x32xf32>
    tpu.vector_store %arg19[%c0_131, %c0_132], %260 {strides = array<i32>} : memref<2x32xf32, #tpu.memory_space<vmem>>, vector<2x32xf32>,
    return
  }
}

</mosaic_0001>

<llo_original>
// kernel: manual_vit_forward.1
$region0: #{manual_vit_forward.1}
  #allocation0 [shape = 'u32[]', space=smem, size = 0x4, offset = 0x4, fixed_abs, tag = 'smem constant byte address 0x4 - core index']
  #allocation1 [shape = 'u32[144,128]{1,0:T(1,128)}', space=vmem, size = 0x12000, scoped, tag = 'internal scratch']
  %s0 = inlined_call_operand.vmem [shape: f32[48,64], index: 0, kind: input, shape index: {}]
  %s1 = inlined_call_operand.vmem [shape: bf16[64,32], index: 1, kind: input, shape index: {}]
  %s2 = inlined_call_operand.vmem [shape: f32[48,32], index: 2, kind: input, shape index: {}]
  %s3 = inlined_call_operand.vmem [shape: bf16[2,32,96], index: 3, kind: input, shape index: {}]
  %s4 = inlined_call_operand.vmem [shape: f32[2,1,96], index: 4, kind: input, shape index: {}]
  %s5 = inlined_call_operand.vmem [shape: bf16[2,32,32], index: 5, kind: input, shape index: {}]
  %s6 = inlined_call_operand.vmem [shape: f32[2,1,32], index: 6, kind: input, shape index: {}]
  %s7 = inlined_call_operand.vmem [shape: f32[2,1,32], index: 7, kind: input, shape index: {}]
  %s8 = inlined_call_operand.vmem [shape: f32[2,1,32], index: 8, kind: input, shape index: {}]
  %s9 = inlined_call_operand.vmem [shape: bf16[2,32,128], index: 9, kind: input, shape index: {}]
  %s10 = inlined_call_operand.vmem [shape: f32[2,1,128], index: 10, kind: input, shape index: {}]
  %s11 = inlined_call_operand.vmem [shape: bf16[2,128,32], index: 11, kind: input, shape index: {}]
  %s12 = inlined_call_operand.vmem [shape: f32[2,1,32], index: 12, kind: input, shape index: {}]
  %s13 = inlined_call_operand.vmem [shape: f32[2,1,32], index: 13, kind: input, shape index: {}]
  %s14 = inlined_call_operand.vmem [shape: f32[2,1,32], index: 14, kind: input, shape index: {}]
  %s15 = inlined_call_operand.vmem [shape: f32[1,32], index: 15, kind: input, shape index: {}]
  %s16 = inlined_call_operand.vmem [shape: f32[1,32], index: 16, kind: input, shape index: {}]
  %s17 = inlined_call_operand.vmem [shape: f32[32,4], index: 17, kind: input, shape index: {}]
  %s18 = inlined_call_operand.vmem [shape: f32[4,32], index: 18, kind: input, shape index: {}]
  %s19 = inlined_call_operand.hbm [shape: f32[2,32], index: 19, kind: output, shape index: {}]
  %s20 = sld [smem:[#allocation0]]
  $region86: #{manual_vit_forward.1} parent=0
    _
  %s22 = ssub.s32 1, %s20
  %s23 = scalar_select 0, %s22, %s20
  $region1: #{manual_vit_forward.1} parent=0
    #allocation2 [shape = 'u8[1024]{0}', space=vmem, size = 0x400, scoped, tag = 'output window, operand 0, single buffered']
    #allocation3 [shape = 's32[1]{0}', space=sflag, size = 0x4, scoped, tag = 'scoped memory for manual_vit_forward.1']
    %24 = vsyncpa [#allocation3], 0
    // Predicated region
    $region2: #{manual_vit_forward.1} parent=1 // pred_check
      _
    $region3: #{manual_vit_forward.1} parent=1 // pred_check_branch
      %26 = sbr.rel (0) target = $region5
    $region4: #{manual_vit_forward.1} parent=1 // pred_region
      _
    $region5: #{manual_vit_forward.1} parent=1 // pred_fallthru
      _
    // Predicated region
    $region6: #{manual_vit_forward.1} parent=1 // pred_check
      _
    $region7: #{manual_vit_forward.1} parent=1 // pred_check_branch
      %28 = sbr.rel (0) target = $region9
    $region8: #{manual_vit_forward.1} parent=1 // pred_region
      _
    $region9: #{manual_vit_forward.1} parent=1 // pred_fallthru
      _
    // Predicated region
    $region10: #{manual_vit_forward.1} parent=1 // pred_check
      _
    $region11: #{manual_vit_forward.1} parent=1 // pred_check_branch
      %30 = sbr.rel (0) target = $region13
    $region12: #{manual_vit_forward.1} parent=1 // pred_region
      _
    $region13: #{manual_vit_forward.1} parent=1 // pred_fallthru
      _
    // Predicated region
    $region14: #{manual_vit_forward.1} parent=1 // pred_check
      _
    $region15: #{manual_vit_forward.1} parent=1 // pred_check_branch
      %32 = sbr.rel (0) target = $region17
    $region16: #{manual_vit_forward.1} parent=1 // pred_region
      _
    $region17: #{manual_vit_forward.1} parent=1 // pred_fallthru
      _
    // Predicated region
    $region18: #{manual_vit_forward.1} parent=1 // pred_check
      _
    $region19: #{manual_vit_forward.1} parent=1 // pred_check_branch
      %34 = sbr.rel (0) target = $region21
    $region20: #{manual_vit_forward.1} parent=1 // pred_region
      _
    $region21: #{manual_vit_forward.1} parent=1 // pred_fallthru
      _
    // Predicated region
    $region22: #{manual_vit_forward.1} parent=1 // pred_check
      _
    $region23: #{manual_vit_forward.1} parent=1 // pred_check_branch
      %36 = sbr.rel (0) target = $region25
    $region24: #{manual_vit_forward.1} parent=1 // pred_region
      _
    $region25: #{manual_vit_forward.1} parent=1 // pred_fallthru
      _
    // Predicated region
    $region26: #{manual_vit_forward.1} parent=1 // pred_check
      _
    $region27: #{manual_vit_forward.1} parent=1 // pred_check_branch
      %38 = sbr.rel (0) target = $region29
    $region28: #{manual_vit_forward.1} parent=1 // pred_region
      _
    $region29: #{manual_vit_forward.1} parent=1 // pred_fallthru
      _
    // Predicated region
    $region30: #{manual_vit_forward.1} parent=1 // pred_check
      _
    $region31: #{manual_vit_forward.1} parent=1 // pred_check_branch
      %40 = sbr.rel (0) target = $region33
    $region32: #{manual_vit_forward.1} parent=1 // pred_region
      _
    $region33: #{manual_vit_forward.1} parent=1 // pred_fallthru
      _
    // Predicated region
    $region34: #{manual_vit_forward.1} parent=1 // pred_check
      _
    $region35: #{manual_vit_forward.1} parent=1 // pred_check_branch
      %42 = sbr.rel (0) target = $region37
    $region36: #{manual_vit_forward.1} parent=1 // pred_region
      _
    $region37: #{manual_vit_forward.1} parent=1 // pred_fallthru
      _
    // Predicated region
    $region38: #{manual_vit_forward.1} parent=1 // pred_check
      _
    $region39: #{manual_vit_forward.1} parent=1 // pred_check_branch
      %44 = sbr.rel (0) target = $region41
    $region40: #{manual_vit_forward.1} parent=1 // pred_region
      _
    $region41: #{manual_vit_forward.1} parent=1 // pred_fallthru
      _
    // Predicated region
    $region42: #{manual_vit_forward.1} parent=1 // pred_check
      _
    $region43: #{manual_vit_forward.1} parent=1 // pred_check_branch
      %46 = sbr.rel (0) target = $region45
    $region44: #{manual_vit_forward.1} parent=1 // pred_region
      _
    $region45: #{manual_vit_forward.1} parent=1 // pred_fallthru
      _
    // Predicated region
    $region46: #{manual_vit_forward.1} parent=1 // pred_check
      _
    $region47: #{manual_vit_forward.1} parent=1 // pred_check_branch
      %48 = sbr.rel (0) target = $region49
    $region48: #{manual_vit_forward.1} parent=1 // pred_region
      _
    $region49: #{manual_vit_forward.1} parent=1 // pred_fallthru
      _
    // Predicated region
    $region50: #{manual_vit_forward.1} parent=1 // pred_check
      _
    $region51: #{manual_vit_forward.1} parent=1 // pred_check_branch
      %50 = sbr.rel (0) target = $region53
    $region52: #{manual_vit_forward.1} parent=1 // pred_region
      _
    $region53: #{manual_vit_forward.1} parent=1 // pred_fallthru
      _
    // Predicated region
    $region54: #{manual_vit_forward.1} parent=1 // pred_check
      _
    $region55: #{manual_vit_forward.1} parent=1 // pred_check_branch
      %52 = sbr.rel (0) target = $region57
    $region56: #{manual_vit_forward.1} parent=1 // pred_region
      _
    $region57: #{manual_vit_forward.1} parent=1 // pred_fallthru
      _
    // Predicated region
    $region58: #{manual_vit_forward.1} parent=1 // pred_check
      _
    $region59: #{manual_vit_forward.1} parent=1 // pred_check_branch
      %54 = sbr.rel (0) target = $region61
    $region60: #{manual_vit_forward.1} parent=1 // pred_region
      _
    $region61: #{manual_vit_forward.1} parent=1 // pred_fallthru
      _
    // Predicated region
    $region62: #{manual_vit_forward.1} parent=1 // pred_check
      _
    $region63: #{manual_vit_forward.1} parent=1 // pred_check_branch
      %56 = sbr.rel (0) target = $region65
    $region64: #{manual_vit_forward.1} parent=1 // pred_region
      _
    $region65: #{manual_vit_forward.1} parent=1 // pred_fallthru
      _
    // Predicated region
    $region66: #{manual_vit_forward.1} parent=1 // pred_check
      _
    $region67: #{manual_vit_forward.1} parent=1 // pred_check_branch
      %58 = sbr.rel (0) target = $region69
    $region68: #{manual_vit_forward.1} parent=1 // pred_region
      _
    $region69: #{manual_vit_forward.1} parent=1 // pred_fallthru
      _
    // Predicated region
    $region70: #{manual_vit_forward.1} parent=1 // pred_check
      _
    $region71: #{manual_vit_forward.1} parent=1 // pred_check_branch
      %60 = sbr.rel (0) target = $region73
    $region72: #{manual_vit_forward.1} parent=1 // pred_region
      _
    $region73: #{manual_vit_forward.1} parent=1 // pred_fallthru
      _
    // Predicated region
    $region74: #{manual_vit_forward.1} parent=1 // pred_check
      _
    $region75: #{manual_vit_forward.1} parent=1 // pred_check_branch
      %62 = sbr.rel (0) target = $region77
    $region76: #{manual_vit_forward.1} parent=1 // pred_region
      _
    $region77: #{manual_vit_forward.1} parent=1 // pred_fallthru
      _
    %v64 = vld [vmem:[%s17] sm:$0xff]
    %v65 = vld [vmem:[%s17 + $0x8] sm:$0xff]
    %v66 = vld [vmem:[%s17 + $0x10] sm:$0xff]
    %v67 = vld [vmem:[%s17 + $0x18] sm:$0xff]
    %v68 = vld [vmem:[%s18] sm:$0xf]
    %v69 = vld [vmem:[%s0] sm:$0xff]
    %v70 = vld [vmem:[%s0 + $0x8] sm:$0xff]
    %v71 = vld [vmem:[%s0 + $0x10] sm:$0xff]
    %v72 = vld [vmem:[%s0 + $0x18] sm:$0xff]
    %v73 = vld [vmem:[%s0 + $0x20] sm:$0xff]
    %v74 = vld [vmem:[%s0 + $0x28] sm:$0xff]
    %v75 = vld [vmem:[%s1] sm:$0xf]
    %v76 = vld [vmem:[%s1 + $0x4] sm:$0xf]
    %v77 = vld [vmem:[%s1 + $0x8] sm:$0xf]
    %v78 = vld [vmem:[%s1 + $0xc] sm:$0xf]
    %v79 = vld [vmem:[%s1 + $0x10] sm:$0xf]
    %v80 = vld [vmem:[%s1 + $0x14] sm:$0xf]
    %v81 = vld [vmem:[%s1 + $0x18] sm:$0xf]
    %v82 = vld [vmem:[%s1 + $0x1c] sm:$0xf]
    %v83 = vpack.c.bf16 %v70, %v69
    %v84 = vpack.c.bf16 %v72, %v71
    %v85 = vpack.c.bf16 %v74, %v73
    %v86 = vld [vmem:[%s2] sm:$0xff]
    %v87 = vld [vmem:[%s2 + $0x8] sm:$0xff]
    %v88 = vld [vmem:[%s2 + $0x10] sm:$0xff]
    %v89 = vld [vmem:[%s2 + $0x18] sm:$0xff]
    %v90 = vld [vmem:[%s2 + $0x20] sm:$0xff]
    %v91 = vld [vmem:[%s2 + $0x28] sm:$0xff]
    %v100 = vunpack.c.l.b16 %v75
    %v101 = vunpack.c.l.b16 %v76
    %v102 = vunpack.c.l.b16 %v77
    %v103 = vunpack.c.l.b16 %v78
    %v104 = vunpack.c.l.b16 %v79
    %v105 = vunpack.c.l.b16 %v80
    %v106 = vunpack.c.l.b16 %v81
    %v107 = vunpack.c.l.b16 %v82
    %v108 = vpack.c.b16 %v101, %v100
    %v109 = vpack.c.b16 %v103, %v102
    %v110 = vpack.c.b16 %v105, %v104
    %v111 = vpack.c.b16 %v107, %v106
    %vm116 = vcmask 523264
    %v118 = vsel %vm116, %v83, 0
    %v121 = vsel %vm116, %v84, 0
    %v124 = vsel %vm116, %v85, 0
    %126 = vmatprep.subr.bf16.mxu0 0
    %127 = vmatpush1.bf16.msra.mxu0 %v108
    %128 = vmatprep.subr.bf16.mxu0 0
    %129 = vmatpush1.bf16.msra.mxu0 %v109
    %130 = vmatprep.subr.bf16.mxu0 0
    %131 = vmatpush1.bf16.msra.mxu0 %v110
    %132 = vmatprep.subr.bf16.mxu0 0
    %133 = vmatpush1.bf16.msra.mxu0 %v111
    %134 = vmatprep.subr.bf16.mxu0 0
    %135 = vmatpush1.bf16.msra.mxu0 0
    %136 = vmatprep.subr.bf16.mxu0 0
    %137 = vmatpush1.bf16.msra.mxu0 0
    %138 = vmatprep.subr.bf16.mxu0 0
    %139 = vmatpush1.bf16.msra.mxu0 0
    %140 = vmatprep.subr.bf16.mxu0 0
    %141 = vmatpush1.bf16.msra.mxu0 0
    %142 = vmatprep.subr.bf16.mxu0 0
    %143 = vmatpush1.bf16.msra.mxu0 0
    %144 = vmatprep.subr.bf16.mxu0 0
    %145 = vmatpush1.bf16.msra.mxu0 0
    %146 = vmatprep.subr.bf16.mxu0 0
    %147 = vmatpush1.bf16.msra.mxu0 0
    %148 = vmatprep.subr.bf16.mxu0 0
    %149 = vmatpush1.bf16.msra.mxu0 0
    %150 = vmatprep.subr.bf16.mxu0 0
    %151 = vmatpush1.bf16.msra.mxu0 0
    %152 = vmatprep.subr.bf16.mxu0 0
    %153 = vmatpush1.bf16.msra.mxu0 0
    %154 = vmatprep.subr.bf16.mxu0 0
    %155 = vmatpush1.bf16.msra.mxu0 0
    %156 = vmatprep.subr.bf16.mxu0 0
    %157 = vmatpush1.bf16.msra.mxu0 0
    %158 = vmatprep.mubr.bf16.mxu0 0
    %159 = vmatmul.mubr.bf16.gmra.mrb[0].mxu0 %v118
    %v160 = vpop.f32.mrb[0].mxu0
    %v161 = vadd.f32 %v86, %v160
    %v162 = vpop.f32.mrb[0].mxu0
    %v163 = vpop.f32.mrb[0].mxu0
    %v164 = vadd.f32 %v87, %v163
    %v165 = vpop.f32.mrb[0].mxu0
    %166 = vmatprep.mubr.bf16.mxu0 0
    %167 = vmatmul.mubr.bf16.gmra.mrb[0].mxu0 %v121
    %v168 = vpop.f32.mrb[0].mxu0
    %v169 = vadd.f32 %v88, %v168
    %v170 = vpop.f32.mrb[0].mxu0
    %v171 = vpop.f32.mrb[0].mxu0
    %v172 = vadd.f32 %v89, %v171
    %v173 = vpop.f32.mrb[0].mxu0
    %174 = vmatprep.mubr.bf16.mxu0 0
    %175 = vmatmul.mubr.bf16.gmra.mrb[0].mxu0 %v124
    %v176 = vpop.f32.mrb[0].mxu0
    %v177 = vadd.f32 %v90, %v176
    %v178 = vpop.f32.mrb[0].mxu0
    %v179 = vpop.f32.mrb[0].mxu0
    %v180 = vadd.f32 %v91, %v179
    %v181 = vpop.f32.mrb[0].mxu0
    %182 = vdwg.mxu0
    %v183 = vld [vmem:[%s3] sm:$0xf]
    %v184 = vld [vmem:[%s3 + $0x4] sm:$0xf]
    %v185 = vld [vmem:[%s3 + $0x8] sm:$0xf]
    %v186 = vld [vmem:[%s3 + $0xc] sm:$0xf]
    %v187 = vpack.c.bf16 %v164, %v161
    %v188 = vpack.c.bf16 %v172, %v169
    %v189 = vpack.c.bf16 %v180, %v177
    %v190 = vld [vmem:[%s4] sm:$0x1]
    %v192 = vlaneseq
    %v193 = vshrl.u32 %v192, 7
    %v194 = vsub.s32 0, %v193
    %v195 = vrot.slane %v190, %v194
    %v201 = vunpack.c.l.b16 %v183
    %v202 = vunpack.c.l.b16 %v184
    %v203 = vunpack.c.l.b16 %v185
    %v204 = vunpack.c.l.b16 %v186
    %v205 = vpack.c.b16 %v202, %v201
    %v206 = vpack.c.b16 %v204, %v203
    %vm209 = vcmask 261120
    %v211 = vsel %vm209, %v187, 0
    %v214 = vsel %vm209, %v188, 0
    %v217 = vsel %vm209, %v189, 0
    %219 = vmatprep.subr.bf16.mxu0 0
    %220 = vmatpush1.bf16.msra.mxu0 %v205
    %221 = vmatprep.subr.bf16.mxu0 0
    %222 = vmatpush1.bf16.msra.mxu0 %v206
    %223 = vmatprep.subr.bf16.mxu0 0
    %224 = vmatpush1.bf16.msra.mxu0 0
    %225 = vmatprep.subr.bf16.mxu0 0
    %226 = vmatpush1.bf16.msra.mxu0 0
    %227 = vmatprep.subr.bf16.mxu0 0
    %228 = vmatpush1.bf16.msra.mxu0 0
    %229 = vmatprep.subr.bf16.mxu0 0
    %230 = vmatpush1.bf16.msra.mxu0 0
    %231 = vmatprep.subr.bf16.mxu0 0
    %232 = vmatpush1.bf16.msra.mxu0 0
    %233 = vmatprep.subr.bf16.mxu0 0
    %234 = vmatpush1.bf16.msra.mxu0 0
    %235 = vmatprep.subr.bf16.mxu0 0
    %236 = vmatpush1.bf16.msra.mxu0 0
    %237 = vmatprep.subr.bf16.mxu0 0
    %238 = vmatpush1.bf16.msra.mxu0 0
    %239 = vmatprep.subr.bf16.mxu0 0
    %240 = vmatpush1.bf16.msra.mxu0 0
    %241 = vmatprep.subr.bf16.mxu0 0
    %242 = vmatpush1.bf16.msra.mxu0 0
    %243 = vmatprep.subr.bf16.mxu0 0
    %244 = vmatpush1.bf16.msra.mxu0 0
    %245 = vmatprep.subr.bf16.mxu0 0
    %246 = vmatpush1.bf16.msra.mxu0 0
    %247 = vmatprep.subr.bf16.mxu0 0
    %248 = vmatpush1.bf16.msra.mxu0 0
    %249 = vmatprep.subr.bf16.mxu0 0
    %250 = vmatpush1.bf16.msra.mxu0 0
    %251 = vmatprep.mubr.bf16.mxu0 0
    %252 = vmatmul.mubr.bf16.gmra.mrb[0].mxu0 %v211
    %v253 = vpop.f32.mrb[0].mxu0
    %v254 = vadd.f32 %v195, %v253
    %v255 = vpop.f32.mrb[0].mxu0
    %v256 = vpop.f32.mrb[0].mxu0
    %v257 = vadd.f32 %v195, %v256
    %v258 = vpop.f32.mrb[0].mxu0
    %259 = vmatprep.mubr.bf16.mxu0 0
    %260 = vmatmul.mubr.bf16.gmra.mrb[0].mxu0 %v214
    %v261 = vpop.f32.mrb[0].mxu0
    %v262 = vadd.f32 %v195, %v261
    %v263 = vpop.f32.mrb[0].mxu0
    %v264 = vpop.f32.mrb[0].mxu0
    %v265 = vadd.f32 %v195, %v264
    %v266 = vpop.f32.mrb[0].mxu0
    %267 = vmatprep.mubr.bf16.mxu0 0
    %268 = vmatmul.mubr.bf16.gmra.mrb[0].mxu0 %v217
    %v269 = vpop.f32.mrb[0].mxu0
    %v270 = vadd.f32 %v195, %v269
    %v271 = vpop.f32.mrb[0].mxu0
    %v272 = vpop.f32.mrb[0].mxu0
    %v273 = vadd.f32 %v195, %v272
    %v274 = vpop.f32.mrb[0].mxu0
    %275 = vdwg.mxu0
    %v276 = vsub.f32 %v254, %v265
    %v277 = vsub.f32 %v257, %v270
    %v278 = vsub.f32 %v262, %v273
    %v279 = vsub.f32 %v265, %v254
    %v280 = vsub.f32 %v270, %v257
    %v281 = vsub.f32 %v273, %v262
    %288 = vrot.lane.b32.xlu0 %v276, 96
    %v289 = vpop.permute.xlu0 %288
    %290 = vrot.lane.b32.xlu0 %v277, 96
    %v291 = vpop.permute.xlu0 %290
    %292 = vrot.lane.b32.xlu0 %v278, 96
    %v293 = vpop.permute.xlu0 %292
    %294 = vrot.lane.b32.xlu0 %v279, 96
    %v295 = vpop.permute.xlu0 %294
    %296 = vrot.lane.b32.xlu0 %v280, 96
    %v297 = vpop.permute.xlu0 %296
    %298 = vrot.lane.b32.xlu0 %v281, 96
    %v299 = vpop.permute.xlu0 %298
    %v306 = vmul.f32 %v254, %v289
    %v307 = vmul.f32 %v257, %v291
    %v308 = vmul.f32 %v262, %v293
    %v309 = vmul.f32 %v265, %v295
    %v310 = vmul.f32 %v270, %v297
    %v311 = vmul.f32 %v273, %v299
    %v313 = vsel %vm209, %v306, 0
    %v316 = vsel %vm209, %v307, 0
    %v319 = vsel %vm209, %v308, 0
    %v322 = vsel %vm209, %v309, 0
    %v325 = vsel %vm209, %v310, 0
    %v328 = vsel %vm209, %v311, 0
    %330 = vmatprep.subr.mxu0 0.0
    %331 = vmatpush1.msra.mxu0 %v64
    %332 = vmatprep.subr.mxu0 0.0
    %333 = vmatpush1.msra.mxu0 %v65
    %334 = vmatprep.subr.mxu0 0.0
    %335 = vmatpush1.msra.mxu0 %v66
    %336 = vmatprep.subr.mxu0 0.0
    %337 = vmatpush1.msra.mxu0 %v67
    %338 = vmatprep.subr.mxu0 0.0
    %339 = vmatpush1.msra.mxu0 0.0
    %340 = vmatprep.subr.mxu0 0.0
    %341 = vmatpush1.msra.mxu0 0.0
    %342 = vmatprep.subr.mxu0 0.0
    %343 = vmatpush1.msra.mxu0 0.0
    %344 = vmatprep.subr.mxu0 0.0
    %345 = vmatpush1.msra.mxu0 0.0
    %346 = vmatprep.subr.mxu0 0.0
    %347 = vmatpush1.msra.mxu0 0.0
    %348 = vmatprep.subr.mxu0 0.0
    %349 = vmatpush1.msra.mxu0 0.0
    %350 = vmatprep.subr.mxu0 0.0
    %351 = vmatpush1.msra.mxu0 0.0
    %352 = vmatprep.subr.mxu0 0.0
    %353 = vmatpush1.msra.mxu0 0.0
    %354 = vmatprep.subr.mxu0 0.0
    %355 = vmatpush1.msra.mxu0 0.0
    %356 = vmatprep.subr.mxu0 0.0
    %357 = vmatpush1.msra.mxu0 0.0
    %358 = vmatprep.subr.mxu0 0.0
    %359 = vmatpush1.msra.mxu0 0.0
    %360 = vmatprep.subr.mxu0 0.0
    %361 = vmatpush1.msra.mxu0 0.0
    %362 = vmatprep.subr.mxu0 0.0
    %363 = vmatpush1.msra.mxu0 0.0
    %364 = vmatprep.subr.mxu0 0.0
    %365 = vmatpush1.msra.mxu0 0.0
    %366 = vmatprep.subr.mxu0 0.0
    %367 = vmatpush1.msra.mxu0 0.0
    %368 = vmatprep.subr.mxu0 0.0
    %369 = vmatpush1.msra.mxu0 0.0
    %370 = vmatprep.subr.mxu0 0.0
    %371 = vmatpush1.msra.mxu0 0.0
    %372 = vmatprep.subr.mxu0 0.0
    %373 = vmatpush1.msra.mxu0 0.0
    %374 = vmatprep.subr.mxu0 0.0
    %375 = vmatpush1.msra.mxu0 0.0
    %376 = vmatprep.subr.mxu0 0.0
    %377 = vmatpush1.msra.mxu0 0.0
    %378 = vmatprep.subr.mxu0 0.0
    %379 = vmatpush1.msra.mxu0 0.0
    %380 = vmatprep.subr.mxu0 0.0
    %381 = vmatpush1.msra.mxu0 0.0
    %382 = vmatprep.subr.mxu0 0.0
    %383 = vmatpush1.msra.mxu0 0.0
    %384 = vmatprep.subr.mxu0 0.0
    %385 = vmatpush1.msra.mxu0 0.0
    %386 = vmatprep.subr.mxu0 0.0
    %387 = vmatpush1.msra.mxu0 0.0
    %388 = vmatprep.subr.mxu0 0.0
    %389 = vmatpush1.msra.mxu0 0.0
    %390 = vmatprep.subr.mxu0 0.0
    %391 = vmatpush1.msra.mxu0 0.0
    %392 = vmatprep.subr.mxu0 0.0
    %393 = vmatpush1.msra.mxu0 0.0
    %394 = vmatprep.mubr.f32.mxu0 0.0
    %395 = vmatmul.mubr.f32.gmra.mrb[0].mxu0 %v313
    %v396 = vpop.f32.mrb[0].mxu0
    %v397 = vadd.f32 0.0, %v396
    %v398 = vpop.f32.mrb[0].mxu0
    %399 = vmatprep.mubr.f32.mxu0 0.0
    %400 = vmatmul.mubr.f32.gmra.mrb[0].mxu0 %v316
    %v401 = vpop.f32.mrb[0].mxu0
    %v402 = vadd.f32 0.0, %v401
    %v403 = vpop.f32.mrb[0].mxu0
    %404 = vmatprep.mubr.f32.mxu0 0.0
    %405 = vmatmul.mubr.f32.gmra.mrb[0].mxu0 %v319
    %v406 = vpop.f32.mrb[0].mxu0
    %v407 = vadd.f32 0.0, %v406
    %v408 = vpop.f32.mrb[0].mxu0
    %409 = vmatprep.mubr.f32.mxu0 0.0
    %410 = vmatmul.mubr.f32.gmra.mrb[0].mxu0 %v322
    %v411 = vpop.f32.mrb[0].mxu0
    %v412 = vadd.f32 0.0, %v411
    %v413 = vpop.f32.mrb[0].mxu0
    %414 = vmatprep.mubr.f32.mxu0 0.0
    %415 = vmatmul.mubr.f32.gmra.mrb[0].mxu0 %v325
    %v416 = vpop.f32.mrb[0].mxu0
    %v417 = vadd.f32 0.0, %v416
    %v418 = vpop.f32.mrb[0].mxu0
    %419 = vmatprep.mubr.f32.mxu0 0.0
    %420 = vmatmul.mubr.f32.gmra.mrb[0].mxu0 %v328
    %v421 = vpop.f32.mrb[0].mxu0
    %v422 = vadd.f32 0.0, %v421
    %v423 = vpop.f32.mrb[0].mxu0
    %424 = vdwg.mxu0
    %v425 = vmul.f32 %v397, 0.35355338
    %v426 = vmul.f32 %v402, 0.35355338
    %v427 = vmul.f32 %v407, 0.35355338
    %v428 = vmul.f32 %v412, 0.35355338
    %v429 = vmul.f32 %v417, 0.35355338
    %v430 = vmul.f32 %v422, 0.35355338
    %v431 = vsub.f32 0.0, %v425
    %v432 = vsub.f32 0.0, %v426
    %v433 = vsub.f32 0.0, %v427
    %v434 = vsub.f32 0.0, %v428
    %v435 = vsub.f32 0.0, %v429
    %v436 = vsub.f32 0.0, %v430
    %v437 = vmul.f32 %v431, 1.442695
    %v438 = vpow.pop %v437
    %v439 = vmul.f32 %v432, 1.442695
    %v440 = vpow.pop %v439
    %v441 = vmul.f32 %v433, 1.442695
    %v442 = vpow.pop %v441
    %v443 = vmul.f32 %v434, 1.442695
    %v444 = vpow.pop %v443
    %v445 = vmul.f32 %v435, 1.442695
    %v446 = vpow.pop %v445
    %v447 = vmul.f32 %v436, 1.442695
    %v448 = vpow.pop %v447
    %v449 = vadd.f32 %v438, 1.0
    %v450 = vadd.f32 %v440, 1.0
    %v451 = vadd.f32 %v442, 1.0
    %v452 = vadd.f32 %v444, 1.0
    %v453 = vadd.f32 %v446, 1.0
    %v454 = vadd.f32 %v448, 1.0
    %v455 = vrcp.pop %v449
    %v456 = vmul.f32 1.0, %v455
    %v457 = vrcp.pop %v450
    %v458 = vmul.f32 1.0, %v457
    %v459 = vrcp.pop %v451
    %v460 = vmul.f32 1.0, %v459
    %v461 = vrcp.pop %v452
    %v462 = vmul.f32 1.0, %v461
    %v463 = vrcp.pop %v453
    %v464 = vmul.f32 1.0, %v463
    %v465 = vrcp.pop %v454
    %v466 = vmul.f32 1.0, %v465
    %vm467 = vcmask 31744
    %v469 = vsel %vm467, %v456, 0
    %v472 = vsel %vm467, %v458, 0
    %v475 = vsel %vm467, %v460, 0
    %v478 = vsel %vm467, %v462, 0
    %v481 = vsel %vm467, %v464, 0
    %v484 = vsel %vm467, %v466, 0
    %vm486 = vcmask 1043456
    %v488 = vsel %vm486, %v68, 0
    %490 = vmatprep.subr.mxu0 0.0
    %491 = vmatpush1.msra.mxu0 %v488
    %492 = vmatprep.subr.mxu0 0.0
    %493 = vmatpush1.msra.mxu0 0.0
    %494 = vmatprep.subr.mxu0 0.0
    %495 = vmatpush1.msra.mxu0 0.0
    %496 = vmatprep.subr.mxu0 0.0
    %497 = vmatpush1.msra.mxu0 0.0
    %498 = vmatprep.subr.mxu0 0.0
    %499 = vmatpush1.msra.mxu0 0.0
    %500 = vmatprep.subr.mxu0 0.0
    %501 = vmatpush1.msra.mxu0 0.0
    %502 = vmatprep.subr.mxu0 0.0
    %503 = vmatpush1.msra.mxu0 0.0
    %504 = vmatprep.subr.mxu0 0.0
    %505 = vmatpush1.msra.mxu0 0.0
    %506 = vmatprep.subr.mxu0 0.0
    %507 = vmatpush1.msra.mxu0 0.0
    %508 = vmatprep.subr.mxu0 0.0
    %509 = vmatpush1.msra.mxu0 0.0
    %510 = vmatprep.subr.mxu0 0.0
    %511 = vmatpush1.msra.mxu0 0.0
    %512 = vmatprep.subr.mxu0 0.0
    %513 = vmatpush1.msra.mxu0 0.0
    %514 = vmatprep.subr.mxu0 0.0
    %515 = vmatpush1.msra.mxu0 0.0
    %516 = vmatprep.subr.mxu0 0.0
    %517 = vmatpush1.msra.mxu0 0.0
    %518 = vmatprep.subr.mxu0 0.0
    %519 = vmatpush1.msra.mxu0 0.0
    %520 = vmatprep.subr.mxu0 0.0
    %521 = vmatpush1.msra.mxu0 0.0
    %522 = vmatprep.subr.mxu0 0.0
    %523 = vmatpush1.msra.mxu0 0.0
    %524 = vmatprep.subr.mxu0 0.0
    %525 = vmatpush1.msra.mxu0 0.0
    %526 = vmatprep.subr.mxu0 0.0
    %527 = vmatpush1.msra.mxu0 0.0
    %528 = vmatprep.subr.mxu0 0.0
    %529 = vmatpush1.msra.mxu0 0.0
    %530 = vmatprep.subr.mxu0 0.0
    %531 = vmatpush1.msra.mxu0 0.0
    %532 = vmatprep.subr.mxu0 0.0
    %533 = vmatpush1.msra.mxu0 0.0
    %534 = vmatprep.subr.mxu0 0.0
    %535 = vmatpush1.msra.mxu0 0.0
    %536 = vmatprep.subr.mxu0 0.0
    %537 = vmatpush1.msra.mxu0 0.0
    %538 = vmatprep.subr.mxu0 0.0
    %539 = vmatpush1.msra.mxu0 0.0
    %540 = vmatprep.subr.mxu0 0.0
    %541 = vmatpush1.msra.mxu0 0.0
    %542 = vmatprep.subr.mxu0 0.0
    %543 = vmatpush1.msra.mxu0 0.0
    %544 = vmatprep.subr.mxu0 0.0
    %545 = vmatpush1.msra.mxu0 0.0
    %546 = vmatprep.subr.mxu0 0.0
    %547 = vmatpush1.msra.mxu0 0.0
    %548 = vmatprep.subr.mxu0 0.0
    %549 = vmatpush1.msra.mxu0 0.0
    %550 = vmatprep.subr.mxu0 0.0
    %551 = vmatpush1.msra.mxu0 0.0
    %552 = vmatprep.subr.mxu0 0.0
    %553 = vmatpush1.msra.mxu0 0.0
    %554 = vmatprep.mubr.f32.mxu0 0.0
    %555 = vmatmul.mubr.f32.gmra.mrb[0].mxu0 %v469
    %v556 = vpop.f32.mrb[0].mxu0
    %v557 = vadd.f32 0.0, %v556
    %v558 = vpop.f32.mrb[0].mxu0
    %559 = vmatprep.mubr.f32.mxu0 0.0
    %560 = vmatmul.mubr.f32.gmra.mrb[0].mxu0 %v472
    %v561 = vpop.f32.mrb[0].mxu0
    %v562 = vadd.f32 0.0, %v561
    %v563 = vpop.f32.mrb[0].mxu0
    %564 = vmatprep.mubr.f32.mxu0 0.0
    %565 = vmatmul.mubr.f32.gmra.mrb[0].mxu0 %v475
    %v566 = vpop.f32.mrb[0].mxu0
    %v567 = vadd.f32 0.0, %v566
    %v568 = vpop.f32.mrb[0].mxu0
    %569 = vmatprep.mubr.f32.mxu0 0.0
    %570 = vmatmul.mubr.f32.gmra.mrb[0].mxu0 %v478
    %v571 = vpop.f32.mrb[0].mxu0
    %v572 = vadd.f32 0.0, %v571
    %v573 = vpop.f32.mrb[0].mxu0
    %574 = vmatprep.mubr.f32.mxu0 0.0
    %575 = vmatmul.mubr.f32.gmra.mrb[0].mxu0 %v481
    %v576 = vpop.f32.mrb[0].mxu0
    %v577 = vadd.f32 0.0, %v576
    %v578 = vpop.f32.mrb[0].mxu0
    %579 = vmatprep.mubr.f32.mxu0 0.0
    %580 = vmatmul.mubr.f32.gmra.mrb[0].mxu0 %v484
    %v581 = vpop.f32.mrb[0].mxu0
    %v582 = vadd.f32 0.0, %v581
    %v583 = vpop.f32.mrb[0].mxu0
    %584 = vdwg.mxu0
    %585 = vrot.lane.b32.xlu0 %v276, 64
    %v586 = vpop.permute.xlu0 %585
    %587 = vrot.lane.b32.xlu0 %v277, 64
    %v588 = vpop.permute.xlu0 %587
    %589 = vrot.lane.b32.xlu0 %v278, 64
    %v590 = vpop.permute.xlu0 %589
    %591 = vrot.lane.b32.xlu0 %v279, 64
    %v592 = vpop.permute.xlu0 %591
    %593 = vrot.lane.b32.xlu0 %v280, 64
    %v594 = vpop.permute.xlu0 %593
    %595 = vrot.lane.b32.xlu0 %v281, 64
    %v596 = vpop.permute.xlu0 %595
    %v603 = vmul.f32 %v557, %v586
    %v604 = vmul.f32 %v562, %v588
    %v605 = vmul.f32 %v567, %v590
    %v606 = vmul.f32 %v572, %v592
    %v607 = vmul.f32 %v577, %v594
    %v608 = vmul.f32 %v582, %v596
    %615 = vrot.lane.b32.xlu0 %v603, 64
    %v616 = vpop.permute.xlu0 %615
    %617 = vrot.lane.b32.xlu0 %v604, 64
    %v618 = vpop.permute.xlu0 %617
    %619 = vrot.lane.b32.xlu0 %v605, 64
    %v620 = vpop.permute.xlu0 %619
    %621 = vrot.lane.b32.xlu0 %v606, 64
    %v622 = vpop.permute.xlu0 %621
    %623 = vrot.lane.b32.xlu0 %v607, 64
    %v624 = vpop.permute.xlu0 %623
    %625 = vrot.lane.b32.xlu0 %v608, 64
    %v626 = vpop.permute.xlu0 %625
    %v633 = vadd.f32 %v265, %v616
    %v634 = vadd.f32 %v270, %v618
    %v635 = vadd.f32 %v273, %v620
    %v636 = vadd.f32 %v254, %v622
    %v637 = vadd.f32 %v257, %v624
    %v638 = vadd.f32 %v262, %v626
    %v639 = vld [vmem:[%s5] sm:$0xf]
    %v640 = vld [vmem:[%s5 + $0x4] sm:$0xf]
    %v641 = vld [vmem:[%s5 + $0x8] sm:$0xf]
    %v642 = vld [vmem:[%s5 + $0xc] sm:$0xf]
    %v643 = vpack.c.bf16 %v634, %v633
    %v644 = vpack.c.bf16 %v636, %v635
    %v645 = vpack.c.bf16 %v638, %v637
    %v646 = vld [vmem:[%s6] sm:$0x1]
    %v648 = vlaneseq
    %v649 = vshrl.u32 %v648, 7
    %v650 = vsub.s32 0, %v649
    %v651 = vrot.slane %v646, %v650
    %656 = vrot.lane.b32.xlu0 %v643, 64
    %v657 = vpop.permute.xlu0 %656
    %658 = vrot.lane.b32.xlu0 %v644, 64
    %v659 = vpop.permute.xlu0 %658
    %660 = vrot.lane.b32.xlu0 %v645, 64
    %v661 = vpop.permute.xlu0 %660
    %v666 = vunpack.c.l.b16 %v639
    %v667 = vunpack.c.l.b16 %v640
    %v668 = vunpack.c.l.b16 %v641
    %v669 = vunpack.c.l.b16 %v642
    %v670 = vpack.c.b16 %v667, %v666
    %v671 = vpack.c.b16 %v669, %v668
    %v675 = vsel %vm209, %v657, 0
    %v678 = vsel %vm209, %v659, 0
    %v681 = vsel %vm209, %v661, 0
    %683 = vmatprep.subr.bf16.mxu0 0
    %684 = vmatpush1.bf16.msra.mxu0 %v670
    %685 = vmatprep.subr.bf16.mxu0 0
    %686 = vmatpush1.bf16.msra.mxu0 %v671
    %687 = vmatprep.subr.bf16.mxu0 0
    %688 = vmatpush1.bf16.msra.mxu0 0
    %689 = vmatprep.subr.bf16.mxu0 0
    %690 = vmatpush1.bf16.msra.mxu0 0
    %691 = vmatprep.subr.bf16.mxu0 0
    %692 = vmatpush1.bf16.msra.mxu0 0
    %693 = vmatprep.subr.bf16.mxu0 0
    %694 = vmatpush1.bf16.msra.mxu0 0
    %695 = vmatprep.subr.bf16.mxu0 0
    %696 = vmatpush1.bf16.msra.mxu0 0
    %697 = vmatprep.subr.bf16.mxu0 0
    %698 = vmatpush1.bf16.msra.mxu0 0
    %699 = vmatprep.subr.bf16.mxu0 0
    %700 = vmatpush1.bf16.msra.mxu0 0
    %701 = vmatprep.subr.bf16.mxu0 0
    %702 = vmatpush1.bf16.msra.mxu0 0
    %703 = vmatprep.subr.bf16.mxu0 0
    %704 = vmatpush1.bf16.msra.mxu0 0
    %705 = vmatprep.subr.bf16.mxu0 0
    %706 = vmatpush1.bf16.msra.mxu0 0
    %707 = vmatprep.subr.bf16.mxu0 0
    %708 = vmatpush1.bf16.msra.mxu0 0
    %709 = vmatprep.subr.bf16.mxu0 0
    %710 = vmatpush1.bf16.msra.mxu0 0
    %711 = vmatprep.subr.bf16.mxu0 0
    %712 = vmatpush1.bf16.msra.mxu0 0
    %713 = vmatprep.subr.bf16.mxu0 0
    %714 = vmatpush1.bf16.msra.mxu0 0
    %715 = vmatprep.mubr.bf16.mxu0 0
    %716 = vmatmul.mubr.bf16.gmra.mrb[0].mxu0 %v675
    %v717 = vpop.f32.mrb[0].mxu0
    %v718 = vadd.f32 %v651, %v717
    %v719 = vpop.f32.mrb[0].mxu0
    %v720 = vpop.f32.mrb[0].mxu0
    %v721 = vadd.f32 %v651, %v720
    %v722 = vpop.f32.mrb[0].mxu0
    %723 = vmatprep.mubr.bf16.mxu0 0
    %724 = vmatmul.mubr.bf16.gmra.mrb[0].mxu0 %v678
    %v725 = vpop.f32.mrb[0].mxu0
    %v726 = vadd.f32 %v651, %v725
    %v727 = vpop.f32.mrb[0].mxu0
    %v728 = vpop.f32.mrb[0].mxu0
    %v729 = vadd.f32 %v651, %v728
    %v730 = vpop.f32.mrb[0].mxu0
    %731 = vmatprep.mubr.bf16.mxu0 0
    %732 = vmatmul.mubr.bf16.gmra.mrb[0].mxu0 %v681
    %v733 = vpop.f32.mrb[0].mxu0
    %v734 = vadd.f32 %v651, %v733
    %v735 = vpop.f32.mrb[0].mxu0
    %v736 = vpop.f32.mrb[0].mxu0
    %v737 = vadd.f32 %v651, %v736
    %v738 = vpop.f32.mrb[0].mxu0
    %739 = vdwg.mxu0
    %v740 = vadd.f32 %v161, %v718
    %v741 = vadd.f32 %v164, %v721
    %v742 = vadd.f32 %v169, %v726
    %v743 = vadd.f32 %v172, %v729
    %v744 = vadd.f32 %v177, %v734
    %v745 = vadd.f32 %v180, %v737
    %v746 = vld [vmem:[%s7] sm:$0x1]
    %v747 = vld [vmem:[%s8] sm:$0x1]
    %v748 = vsel %vm209, %v740, 0.0
    %749 = vadd.xlane.f32.xlu0 %v748
    %v750 = vpop.xlane.xlu0 %749
    %v751 = vsel %vm209, %v741, 0.0
    %752 = vadd.xlane.f32.xlu0 %v751
    %v753 = vpop.xlane.xlu0 %752
    %v754 = vsel %vm209, %v742, 0.0
    %755 = vadd.xlane.f32.xlu0 %v754
    %v756 = vpop.xlane.xlu0 %755
    %v757 = vsel %vm209, %v743, 0.0
    %758 = vadd.xlane.f32.xlu0 %v757
    %v759 = vpop.xlane.xlu0 %758
    %v760 = vsel %vm209, %v744, 0.0
    %761 = vadd.xlane.f32.xlu0 %v760
    %v762 = vpop.xlane.xlu0 %761
    %v763 = vsel %vm209, %v745, 0.0
    %764 = vadd.xlane.f32.xlu0 %v763
    %v765 = vpop.xlane.xlu0 %764
    %v766 = vrcp.pop 32.0
    %v767 = vmul.f32 %v750, %v766
    %v768 = vmul.f32 %v753, %v766
    %v769 = vmul.f32 %v756, %v766
    %v770 = vmul.f32 %v759, %v766
    %v771 = vmul.f32 %v762, %v766
    %v772 = vmul.f32 %v765, %v766
    %v773 = vsub.f32 %v740, %v767
    %v774 = vsub.f32 %v741, %v768
    %v775 = vsub.f32 %v742, %v769
    %v776 = vsub.f32 %v743, %v770
    %v777 = vsub.f32 %v744, %v771
    %v778 = vsub.f32 %v745, %v772
    %v779 = vmul.f32 %v773, %v773
    %v780 = vmul.f32 %v774, %v774
    %v781 = vmul.f32 %v775, %v775
    %v782 = vmul.f32 %v776, %v776
    %v783 = vmul.f32 %v777, %v777
    %v784 = vmul.f32 %v778, %v778
    %v785 = vsel %vm209, %v779, 0.0
    %786 = vadd.xlane.f32.xlu0 %v785
    %v787 = vpop.xlane.xlu0 %786
    %v788 = vsel %vm209, %v780, 0.0
    %789 = vadd.xlane.f32.xlu0 %v788
    %v790 = vpop.xlane.xlu0 %789
    %v791 = vsel %vm209, %v781, 0.0
    %792 = vadd.xlane.f32.xlu0 %v791
    %v793 = vpop.xlane.xlu0 %792
    %v794 = vsel %vm209, %v782, 0.0
    %795 = vadd.xlane.f32.xlu0 %v794
    %v796 = vpop.xlane.xlu0 %795
    %v797 = vsel %vm209, %v783, 0.0
    %798 = vadd.xlane.f32.xlu0 %v797
    %v799 = vpop.xlane.xlu0 %798
    %v800 = vsel %vm209, %v784, 0.0
    %801 = vadd.xlane.f32.xlu0 %v800
    %v802 = vpop.xlane.xlu0 %801
    %v803 = vmul.f32 %v787, %v766
    %v804 = vmul.f32 %v790, %v766
    %v805 = vmul.f32 %v793, %v766
    %v806 = vmul.f32 %v796, %v766
    %v807 = vmul.f32 %v799, %v766
    %v808 = vmul.f32 %v802, %v766
    %v809 = vadd.f32 %v803, 1e-05
    %v810 = vadd.f32 %v804, 1e-05
    %v811 = vadd.f32 %v805, 1e-05
    %v812 = vadd.f32 %v806, 1e-05
    %v813 = vadd.f32 %v807, 1e-05
    %v814 = vadd.f32 %v808, 1e-05
    %v815 = vrsqrt.pop %v809
    %v816 = vrsqrt.pop %v810
    %v817 = vrsqrt.pop %v811
    %v818 = vrsqrt.pop %v812
    %v819 = vrsqrt.pop %v813
    %v820 = vrsqrt.pop %v814
    %v821 = vmul.f32 %v773, %v815
    %v822 = vmul.f32 %v774, %v816
    %v823 = vmul.f32 %v775, %v817
    %v824 = vmul.f32 %v776, %v818
    %v825 = vmul.f32 %v777, %v819
    %v826 = vmul.f32 %v778, %v820
    %v828 = vlaneseq
    %v829 = vshrl.u32 %v828, 7
    %v830 = vsub.s32 0, %v829
    %v831 = vrot.slane %v746, %v830
    %v833 = vmul.f32 %v821, %v831
    %v834 = vmul.f32 %v822, %v831
    %v835 = vmul.f32 %v823, %v831
    %v836 = vmul.f32 %v824, %v831
    %v837 = vmul.f32 %v825, %v831
    %v838 = vmul.f32 %v826, %v831
    %v840 = vlaneseq
    %v841 = vshrl.u32 %v840, 7
    %v842 = vsub.s32 0, %v841
    %v843 = vrot.slane %v747, %v842
    %v845 = vadd.f32 %v833, %v843
    %v846 = vadd.f32 %v834, %v843
    %v847 = vadd.f32 %v835, %v843
    %v848 = vadd.f32 %v836, %v843
    %v849 = vadd.f32 %v837, %v843
    %v850 = vadd.f32 %v838, %v843
    %v851 = vld [vmem:[%s9] sm:$0xf]
    %v852 = vld [vmem:[%s9 + $0x4] sm:$0xf]
    %v853 = vld [vmem:[%s9 + $0x8] sm:$0xf]
    %v854 = vld [vmem:[%s9 + $0xc] sm:$0xf]
    %v855 = vpack.c.bf16 %v846, %v845
    %v856 = vpack.c.bf16 %v848, %v847
    %v857 = vpack.c.bf16 %v850, %v849
    %v858 = vld [vmem:[%s10] sm:$0x1]
    %v860 = vlaneseq
    %v861 = vshrl.u32 %v860, 7
    %v862 = vsub.s32 0, %v861
    %v863 = vrot.slane %v858, %v862
    %v869 = vunpack.c.l.b16 %v851
    %v870 = vunpack.c.l.b16 %v852
    %v871 = vunpack.c.l.b16 %v853
    %v872 = vunpack.c.l.b16 %v854
    %v873 = vpack.c.b16 %v870, %v869
    %v874 = vpack.c.b16 %v872, %v871
    %v878 = vsel %vm209, %v855, 0
    %v881 = vsel %vm209, %v856, 0
    %v884 = vsel %vm209, %v857, 0
    %886 = vmatprep.subr.bf16.mxu0 0
    %887 = vmatpush1.bf16.msra.mxu0 %v873
    %888 = vmatprep.subr.bf16.mxu0 0
    %889 = vmatpush1.bf16.msra.mxu0 %v874
    %890 = vmatprep.subr.bf16.mxu0 0
    %891 = vmatpush1.bf16.msra.mxu0 0
    %892 = vmatprep.subr.bf16.mxu0 0
    %893 = vmatpush1.bf16.msra.mxu0 0
    %894 = vmatprep.subr.bf16.mxu0 0
    %895 = vmatpush1.bf16.msra.mxu0 0
    %896 = vmatprep.subr.bf16.mxu0 0
    %897 = vmatpush1.bf16.msra.mxu0 0
    %898 = vmatprep.subr.bf16.mxu0 0
    %899 = vmatpush1.bf16.msra.mxu0 0
    %900 = vmatprep.subr.bf16.mxu0 0
    %901 = vmatpush1.bf16.msra.mxu0 0
    %902 = vmatprep.subr.bf16.mxu0 0
    %903 = vmatpush1.bf16.msra.mxu0 0
    %904 = vmatprep.subr.bf16.mxu0 0
    %905 = vmatpush1.bf16.msra.mxu0 0
    %906 = vmatprep.subr.bf16.mxu0 0
    %907 = vmatpush1.bf16.msra.mxu0 0
    %908 = vmatprep.subr.bf16.mxu0 0
    %909 = vmatpush1.bf16.msra.mxu0 0
    %910 = vmatprep.subr.bf16.mxu0 0
    %911 = vmatpush1.bf16.msra.mxu0 0
    %912 = vmatprep.subr.bf16.mxu0 0
    %913 = vmatpush1.bf16.msra.mxu0 0
    %914 = vmatprep.subr.bf16.mxu0 0
    %915 = vmatpush1.bf16.msra.mxu0 0
    %916 = vmatprep.subr.bf16.mxu0 0
    %917 = vmatpush1.bf16.msra.mxu0 0
    %918 = vmatprep.mubr.bf16.mxu0 0
    %919 = vmatmul.mubr.bf16.gmra.mrb[0].mxu0 %v878
    %v920 = vpop.f32.mrb[0].mxu0
    %v921 = vadd.f32 %v863, %v920
    %v922 = vpop.f32.mrb[0].mxu0
    %v923 = vpop.f32.mrb[0].mxu0
    %v924 = vadd.f32 %v863, %v923
    %v925 = vpop.f32.mrb[0].mxu0
    %926 = vmatprep.mubr.bf16.mxu0 0
    %927 = vmatmul.mubr.bf16.gmra.mrb[0].mxu0 %v881
    %v928 = vpop.f32.mrb[0].mxu0
    %v929 = vadd.f32 %v863, %v928
    %v930 = vpop.f32.mrb[0].mxu0
    %v931 = vpop.f32.mrb[0].mxu0
    %v932 = vadd.f32 %v863, %v931
    %v933 = vpop.f32.mrb[0].mxu0
    %934 = vmatprep.mubr.bf16.mxu0 0
    %935 = vmatmul.mubr.bf16.gmra.mrb[0].mxu0 %v884
    %v936 = vpop.f32.mrb[0].mxu0
    %v937 = vadd.f32 %v863, %v936
    %v938 = vpop.f32.mrb[0].mxu0
    %v939 = vpop.f32.mrb[0].mxu0
    %v940 = vadd.f32 %v863, %v939
    %v941 = vpop.f32.mrb[0].mxu0
    %942 = vdwg.mxu0
    %v943 = vmax.f32 %v921, 0.0
    %v944 = vmax.f32 %v924, 0.0
    %v945 = vmax.f32 %v929, 0.0
    %v946 = vmax.f32 %v932, 0.0
    %v947 = vmax.f32 %v937, 0.0
    %v948 = vmax.f32 %v940, 0.0
    %v949 = vld [vmem:[%s11] sm:$0xf]
    %v950 = vld [vmem:[%s11 + $0x4] sm:$0xf]
    %v951 = vld [vmem:[%s11 + $0x8] sm:$0xf]
    %v952 = vld [vmem:[%s11 + $0xc] sm:$0xf]
    %v953 = vld [vmem:[%s11 + $0x10] sm:$0xf]
    %v954 = vld [vmem:[%s11 + $0x14] sm:$0xf]
    %v955 = vld [vmem:[%s11 + $0x18] sm:$0xf]
    %v956 = vld [vmem:[%s11 + $0x1c] sm:$0xf]
    %v957 = vld [vmem:[%s11 + $0x20] sm:$0xf]
    %v958 = vld [vmem:[%s11 + $0x24] sm:$0xf]
    %v959 = vld [vmem:[%s11 + $0x28] sm:$0xf]
    %v960 = vld [vmem:[%s11 + $0x2c] sm:$0xf]
    %v961 = vld [vmem:[%s11 + $0x30] sm:$0xf]
    %v962 = vld [vmem:[%s11 + $0x34] sm:$0xf]
    %v963 = vld [vmem:[%s11 + $0x38] sm:$0xf]
    %v964 = vld [vmem:[%s11 + $0x3c] sm:$0xf]
    %v965 = vpack.c.bf16 %v944, %v943
    %v966 = vpack.c.bf16 %v946, %v945
    %v967 = vpack.c.bf16 %v948, %v947
    %v968 = vld [vmem:[%s12] sm:$0x1]
    %v970 = vlaneseq
    %v971 = vshrl.u32 %v970, 7
    %v972 = vsub.s32 0, %v971
    %v973 = vrot.slane %v968, %v972
    %v991 = vunpack.c.l.b16 %v949
    %v992 = vunpack.c.l.b16 %v950
    %v993 = vunpack.c.l.b16 %v951
    %v994 = vunpack.c.l.b16 %v952
    %v995 = vunpack.c.l.b16 %v953
    %v996 = vunpack.c.l.b16 %v954
    %v997 = vunpack.c.l.b16 %v955
    %v998 = vunpack.c.l.b16 %v956
    %v999 = vunpack.c.l.b16 %v957
    %v1000 = vunpack.c.l.b16 %v958
    %v1001 = vunpack.c.l.b16 %v959
    %v1002 = vunpack.c.l.b16 %v960
    %v1003 = vunpack.c.l.b16 %v961
    %v1004 = vunpack.c.l.b16 %v962
    %v1005 = vunpack.c.l.b16 %v963
    %v1006 = vunpack.c.l.b16 %v964
    %v1007 = vpack.c.b16 %v992, %v991
    %v1008 = vpack.c.b16 %v994, %v993
    %v1009 = vpack.c.b16 %v996, %v995
    %v1010 = vpack.c.b16 %v998, %v997
    %v1011 = vpack.c.b16 %v1000, %v999
    %v1012 = vpack.c.b16 %v1002, %v1001
    %v1013 = vpack.c.b16 %v1004, %v1003
    %v1014 = vpack.c.b16 %v1006, %v1005
    %1023 = vmatprep.subr.bf16.mxu0 0
    %1024 = vmatpush1.bf16.msra.mxu0 %v1007
    %1025 = vmatprep.subr.bf16.mxu0 0
    %1026 = vmatpush1.bf16.msra.mxu0 %v1008
    %1027 = vmatprep.subr.bf16.mxu0 0
    %1028 = vmatpush1.bf16.msra.mxu0 %v1009
    %1029 = vmatprep.subr.bf16.mxu0 0
    %1030 = vmatpush1.bf16.msra.mxu0 %v1010
    %1031 = vmatprep.subr.bf16.mxu0 0
    %1032 = vmatpush1.bf16.msra.mxu0 %v1011
    %1033 = vmatprep.subr.bf16.mxu0 0
    %1034 = vmatpush1.bf16.msra.mxu0 %v1012
    %1035 = vmatprep.subr.bf16.mxu0 0
    %1036 = vmatpush1.bf16.msra.mxu0 %v1013
    %1037 = vmatprep.subr.bf16.mxu0 0
    %1038 = vmatpush1.bf16.msra.mxu0 %v1014
    %1039 = vmatprep.subr.bf16.mxu0 0
    %1040 = vmatpush1.bf16.msra.mxu0 0
    %1041 = vmatprep.subr.bf16.mxu0 0
    %1042 = vmatpush1.bf16.msra.mxu0 0
    %1043 = vmatprep.subr.bf16.mxu0 0
    %1044 = vmatpush1.bf16.msra.mxu0 0
    %1045 = vmatprep.subr.bf16.mxu0 0
    %1046 = vmatpush1.bf16.msra.mxu0 0
    %1047 = vmatprep.subr.bf16.mxu0 0
    %1048 = vmatpush1.bf16.msra.mxu0 0
    %1049 = vmatprep.subr.bf16.mxu0 0
    %1050 = vmatpush1.bf16.msra.mxu0 0
    %1051 = vmatprep.subr.bf16.mxu0 0
    %1052 = vmatpush1.bf16.msra.mxu0 0
    %1053 = vmatprep.subr.bf16.mxu0 0
    %1054 = vmatpush1.bf16.msra.mxu0 0
    %1055 = vmatprep.mubr.bf16.mxu0 0
    %1056 = vmatmul.mubr.bf16.gmra.mrb[0].mxu0 %v965
    %v1057 = vpop.f32.mrb[0].mxu0
    %v1058 = vadd.f32 %v973, %v1057
    %v1059 = vpop.f32.mrb[0].mxu0
    %v1060 = vpop.f32.mrb[0].mxu0
    %v1061 = vadd.f32 %v973, %v1060
    %v1062 = vpop.f32.mrb[0].mxu0
    %1063 = vmatprep.mubr.bf16.mxu0 0
    %1064 = vmatmul.mubr.bf16.gmra.mrb[0].mxu0 %v966
    %v1065 = vpop.f32.mrb[0].mxu0
    %v1066 = vadd.f32 %v973, %v1065
    %v1067 = vpop.f32.mrb[0].mxu0
    %v1068 = vpop.f32.mrb[0].mxu0
    %v1069 = vadd.f32 %v973, %v1068
    %v1070 = vpop.f32.mrb[0].mxu0
    %1071 = vmatprep.mubr.bf16.mxu0 0
    %1072 = vmatmul.mubr.bf16.gmra.mrb[0].mxu0 %v967
    %v1073 = vpop.f32.mrb[0].mxu0
    %v1074 = vadd.f32 %v973, %v1073
    %v1075 = vpop.f32.mrb[0].mxu0
    %v1076 = vpop.f32.mrb[0].mxu0
    %v1077 = vadd.f32 %v973, %v1076
    %v1078 = vpop.f32.mrb[0].mxu0
    %1079 = vdwg.mxu0
    %v1080 = vadd.f32 %v845, %v1058
    %v1081 = vadd.f32 %v846, %v1061
    %v1082 = vadd.f32 %v847, %v1066
    %v1083 = vadd.f32 %v848, %v1069
    %v1084 = vadd.f32 %v849, %v1074
    %v1085 = vadd.f32 %v850, %v1077
    %v1086 = vld [vmem:[%s13] sm:$0x1]
    %v1087 = vld [vmem:[%s14] sm:$0x1]
    %v1088 = vsel %vm209, %v1080, 0.0
    %1089 = vadd.xlane.f32.xlu0 %v1088
    %v1090 = vpop.xlane.xlu0 %1089
    %v1091 = vsel %vm209, %v1081, 0.0
    %1092 = vadd.xlane.f32.xlu0 %v1091
    %v1093 = vpop.xlane.xlu0 %1092
    %v1094 = vsel %vm209, %v1082, 0.0
    %1095 = vadd.xlane.f32.xlu0 %v1094
    %v1096 = vpop.xlane.xlu0 %1095
    %v1097 = vsel %vm209, %v1083, 0.0
    %1098 = vadd.xlane.f32.xlu0 %v1097
    %v1099 = vpop.xlane.xlu0 %1098
    %v1100 = vsel %vm209, %v1084, 0.0
    %1101 = vadd.xlane.f32.xlu0 %v1100
    %v1102 = vpop.xlane.xlu0 %1101
    %v1103 = vsel %vm209, %v1085, 0.0
    %1104 = vadd.xlane.f32.xlu0 %v1103
    %v1105 = vpop.xlane.xlu0 %1104
    %v1106 = vmul.f32 %v1090, %v766
    %v1107 = vmul.f32 %v1093, %v766
    %v1108 = vmul.f32 %v1096, %v766
    %v1109 = vmul.f32 %v1099, %v766
    %v1110 = vmul.f32 %v1102, %v766
    %v1111 = vmul.f32 %v1105, %v766
    %v1112 = vsub.f32 %v1080, %v1106
    %v1113 = vsub.f32 %v1081, %v1107
    %v1114 = vsub.f32 %v1082, %v1108
    %v1115 = vsub.f32 %v1083, %v1109
    %v1116 = vsub.f32 %v1084, %v1110
    %v1117 = vsub.f32 %v1085, %v1111
    %v1118 = vmul.f32 %v1112, %v1112
    %v1119 = vmul.f32 %v1113, %v1113
    %v1120 = vmul.f32 %v1114, %v1114
    %v1121 = vmul.f32 %v1115, %v1115
    %v1122 = vmul.f32 %v1116, %v1116
    %v1123 = vmul.f32 %v1117, %v1117
    %v1124 = vsel %vm209, %v1118, 0.0
    %1125 = vadd.xlane.f32.xlu0 %v1124
    %v1126 = vpop.xlane.xlu0 %1125
    %v1127 = vsel %vm209, %v1119, 0.0
    %1128 = vadd.xlane.f32.xlu0 %v1127
    %v1129 = vpop.xlane.xlu0 %1128
    %v1130 = vsel %vm209, %v1120, 0.0
    %1131 = vadd.xlane.f32.xlu0 %v1130
    %v1132 = vpop.xlane.xlu0 %1131
    %v1133 = vsel %vm209, %v1121, 0.0
    %1134 = vadd.xlane.f32.xlu0 %v1133
    %v1135 = vpop.xlane.xlu0 %1134
    %v1136 = vsel %vm209, %v1122, 0.0
    %1137 = vadd.xlane.f32.xlu0 %v1136
    %v1138 = vpop.xlane.xlu0 %1137
    %v1139 = vsel %vm209, %v1123, 0.0
    %1140 = vadd.xlane.f32.xlu0 %v1139
    %v1141 = vpop.xlane.xlu0 %1140
    %v1142 = vmul.f32 %v1126, %v766
    %v1143 = vmul.f32 %v1129, %v766
    %v1144 = vmul.f32 %v1132, %v766
    %v1145 = vmul.f32 %v1135, %v766
    %v1146 = vmul.f32 %v1138, %v766
    %v1147 = vmul.f32 %v1141, %v766
    %v1148 = vadd.f32 %v1142, 1e-05
    %v1149 = vadd.f32 %v1143, 1e-05
    %v1150 = vadd.f32 %v1144, 1e-05
    %v1151 = vadd.f32 %v1145, 1e-05
    %v1152 = vadd.f32 %v1146, 1e-05
    %v1153 = vadd.f32 %v1147, 1e-05
    %v1154 = vrsqrt.pop %v1148
    %v1155 = vrsqrt.pop %v1149
    %v1156 = vrsqrt.pop %v1150
    %v1157 = vrsqrt.pop %v1151
    %v1158 = vrsqrt.pop %v1152
    %v1159 = vrsqrt.pop %v1153
    %v1160 = vmul.f32 %v1112, %v1154
    %v1161 = vmul.f32 %v1113, %v1155
    %v1162 = vmul.f32 %v1114, %v1156
    %v1163 = vmul.f32 %v1115, %v1157
    %v1164 = vmul.f32 %v1116, %v1158
    %v1165 = vmul.f32 %v1117, %v1159
    %v1167 = vlaneseq
    %v1168 = vshrl.u32 %v1167, 7
    %v1169 = vsub.s32 0, %v1168
    %v1170 = vrot.slane %v1086, %v1169
    %v1172 = vmul.f32 %v1160, %v1170
    %v1173 = vmul.f32 %v1161, %v1170
    %v1174 = vmul.f32 %v1162, %v1170
    %v1175 = vmul.f32 %v1163, %v1170
    %v1176 = vmul.f32 %v1164, %v1170
    %v1177 = vmul.f32 %v1165, %v1170
    %v1179 = vlaneseq
    %v1180 = vshrl.u32 %v1179, 7
    %v1181 = vsub.s32 0, %v1180
    %v1182 = vrot.slane %v1087, %v1181
    %v1184 = vadd.f32 %v1172, %v1182
    %v1185 = vadd.f32 %v1173, %v1182
    %v1186 = vadd.f32 %v1174, %v1182
    %v1187 = vadd.f32 %v1175, %v1182
    %v1188 = vadd.f32 %v1176, %v1182
    %v1189 = vadd.f32 %v1177, %v1182
    %s1190 = scalar_lea.vmem %s3, 16
    %v1191 = vld [vmem:[%s1190] sm:$0xf]
    %v1192 = vld [vmem:[%s1190 + $0x4] sm:$0xf]
    %v1193 = vld [vmem:[%s1190 + $0x8] sm:$0xf]
    %v1194 = vld [vmem:[%s1190 + $0xc] sm:$0xf]
    %v1195 = vpack.c.bf16 %v1185, %v1184
    %v1196 = vpack.c.bf16 %v1187, %v1186
    %v1197 = vpack.c.bf16 %v1189, %v1188
    %s1198 = scalar_lea.vmem %s4, 1
    %v1199 = vld [vmem:[%s1198] sm:$0x1]
    %v1201 = vlaneseq
    %v1202 = vshrl.u32 %v1201, 7
    %v1203 = vsub.s32 0, %v1202
    %v1204 = vrot.slane %v1199, %v1203
    %v1210 = vunpack.c.l.b16 %v1191
    %v1211 = vunpack.c.l.b16 %v1192
    %v1212 = vunpack.c.l.b16 %v1193
    %v1213 = vunpack.c.l.b16 %v1194
    %v1214 = vpack.c.b16 %v1211, %v1210
    %v1215 = vpack.c.b16 %v1213, %v1212
    %v1219 = vsel %vm209, %v1195, 0
    %v1222 = vsel %vm209, %v1196, 0
    %v1225 = vsel %vm209, %v1197, 0
    %1227 = vmatprep.subr.bf16.mxu0 0
    %1228 = vmatpush1.bf16.msra.mxu0 %v1214
    %1229 = vmatprep.subr.bf16.mxu0 0
    %1230 = vmatpush1.bf16.msra.mxu0 %v1215
    %1231 = vmatprep.subr.bf16.mxu0 0
    %1232 = vmatpush1.bf16.msra.mxu0 0
    %1233 = vmatprep.subr.bf16.mxu0 0
    %1234 = vmatpush1.bf16.msra.mxu0 0
    %1235 = vmatprep.subr.bf16.mxu0 0
    %1236 = vmatpush1.bf16.msra.mxu0 0
    %1237 = vmatprep.subr.bf16.mxu0 0
    %1238 = vmatpush1.bf16.msra.mxu0 0
    %1239 = vmatprep.subr.bf16.mxu0 0
    %1240 = vmatpush1.bf16.msra.mxu0 0
    %1241 = vmatprep.subr.bf16.mxu0 0
    %1242 = vmatpush1.bf16.msra.mxu0 0
    %1243 = vmatprep.subr.bf16.mxu0 0
    %1244 = vmatpush1.bf16.msra.mxu0 0
    %1245 = vmatprep.subr.bf16.mxu0 0
    %1246 = vmatpush1.bf16.msra.mxu0 0
    %1247 = vmatprep.subr.bf16.mxu0 0
    %1248 = vmatpush1.bf16.msra.mxu0 0
    %1249 = vmatprep.subr.bf16.mxu0 0
    %1250 = vmatpush1.bf16.msra.mxu0 0
    %1251 = vmatprep.subr.bf16.mxu0 0
    %1252 = vmatpush1.bf16.msra.mxu0 0
    %1253 = vmatprep.subr.bf16.mxu0 0
    %1254 = vmatpush1.bf16.msra.mxu0 0
    %1255 = vmatprep.subr.bf16.mxu0 0
    %1256 = vmatpush1.bf16.msra.mxu0 0
    %1257 = vmatprep.subr.bf16.mxu0 0
    %1258 = vmatpush1.bf16.msra.mxu0 0
    %1259 = vmatprep.mubr.bf16.mxu0 0
    %1260 = vmatmul.mubr.bf16.gmra.mrb[0].mxu0 %v1219
    %v1261 = vpop.f32.mrb[0].mxu0
    %v1262 = vadd.f32 %v1204, %v1261
    %v1263 = vpop.f32.mrb[0].mxu0
    %v1264 = vpop.f32.mrb[0].mxu0
    %v1265 = vadd.f32 %v1204, %v1264
    %v1266 = vpop.f32.mrb[0].mxu0
    %1267 = vmatprep.mubr.bf16.mxu0 0
    %1268 = vmatmul.mubr.bf16.gmra.mrb[0].mxu0 %v1222
    %v1269 = vpop.f32.mrb[0].mxu0
    %v1270 = vadd.f32 %v1204, %v1269
    %v1271 = vpop.f32.mrb[0].mxu0
    %v1272 = vpop.f32.mrb[0].mxu0
    %v1273 = vadd.f32 %v1204, %v1272
    %v1274 = vpop.f32.mrb[0].mxu0
    %1275 = vmatprep.mubr.bf16.mxu0 0
    %1276 = vmatmul.mubr.bf16.gmra.mrb[0].mxu0 %v1225
    %v1277 = vpop.f32.mrb[0].mxu0
    %v1278 = vadd.f32 %v1204, %v1277
    %v1279 = vpop.f32.mrb[0].mxu0
    %v1280 = vpop.f32.mrb[0].mxu0
    %v1281 = vadd.f32 %v1204, %v1280
    %v1282 = vpop.f32.mrb[0].mxu0
    %1283 = vdwg.mxu0
    %v1284 = vsub.f32 %v1262, %v1273
    %v1285 = vsub.f32 %v1265, %v1278
    %v1286 = vsub.f32 %v1270, %v1281
    %v1287 = vsub.f32 %v1273, %v1262
    %v1288 = vsub.f32 %v1278, %v1265
    %v1289 = vsub.f32 %v1281, %v1270
    %1296 = vrot.lane.b32.xlu0 %v1284, 96
    %v1297 = vpop.permute.xlu0 %1296
    %1298 = vrot.lane.b32.xlu0 %v1285, 96
    %v1299 = vpop.permute.xlu0 %1298
    %1300 = vrot.lane.b32.xlu0 %v1286, 96
    %v1301 = vpop.permute.xlu0 %1300
    %1302 = vrot.lane.b32.xlu0 %v1287, 96
    %v1303 = vpop.permute.xlu0 %1302
    %1304 = vrot.lane.b32.xlu0 %v1288, 96
    %v1305 = vpop.permute.xlu0 %1304
    %1306 = vrot.lane.b32.xlu0 %v1289, 96
    %v1307 = vpop.permute.xlu0 %1306
    %v1314 = vmul.f32 %v1262, %v1297
    %v1315 = vmul.f32 %v1265, %v1299
    %v1316 = vmul.f32 %v1270, %v1301
    %v1317 = vmul.f32 %v1273, %v1303
    %v1318 = vmul.f32 %v1278, %v1305
    %v1319 = vmul.f32 %v1281, %v1307
    %v1321 = vsel %vm209, %v1314, 0
    %v1324 = vsel %vm209, %v1315, 0
    %v1327 = vsel %vm209, %v1316, 0
    %v1330 = vsel %vm209, %v1317, 0
    %v1333 = vsel %vm209, %v1318, 0
    %v1336 = vsel %vm209, %v1319, 0
    %1338 = vmatprep.subr.mxu0 0.0
    %1339 = vmatpush1.msra.mxu0 %v64
    %1340 = vmatprep.subr.mxu0 0.0
    %1341 = vmatpush1.msra.mxu0 %v65
    %1342 = vmatprep.subr.mxu0 0.0
    %1343 = vmatpush1.msra.mxu0 %v66
    %1344 = vmatprep.subr.mxu0 0.0
    %1345 = vmatpush1.msra.mxu0 %v67
    %1346 = vmatprep.subr.mxu0 0.0
    %1347 = vmatpush1.msra.mxu0 0.0
    %1348 = vmatprep.subr.mxu0 0.0
    %1349 = vmatpush1.msra.mxu0 0.0
    %1350 = vmatprep.subr.mxu0 0.0
    %1351 = vmatpush1.msra.mxu0 0.0
    %1352 = vmatprep.subr.mxu0 0.0
    %1353 = vmatpush1.msra.mxu0 0.0
    %1354 = vmatprep.subr.mxu0 0.0
    %1355 = vmatpush1.msra.mxu0 0.0
    %1356 = vmatprep.subr.mxu0 0.0
    %1357 = vmatpush1.msra.mxu0 0.0
    %1358 = vmatprep.subr.mxu0 0.0
    %1359 = vmatpush1.msra.mxu0 0.0
    %1360 = vmatprep.subr.mxu0 0.0
    %1361 = vmatpush1.msra.mxu0 0.0
    %1362 = vmatprep.subr.mxu0 0.0
    %1363 = vmatpush1.msra.mxu0 0.0
    %1364 = vmatprep.subr.mxu0 0.0
    %1365 = vmatpush1.msra.mxu0 0.0
    %1366 = vmatprep.subr.mxu0 0.0
    %1367 = vmatpush1.msra.mxu0 0.0
    %1368 = vmatprep.subr.mxu0 0.0
    %1369 = vmatpush1.msra.mxu0 0.0
    %1370 = vmatprep.subr.mxu0 0.0
    %1371 = vmatpush1.msra.mxu0 0.0
    %1372 = vmatprep.subr.mxu0 0.0
    %1373 = vmatpush1.msra.mxu0 0.0
    %1374 = vmatprep.subr.mxu0 0.0
    %1375 = vmatpush1.msra.mxu0 0.0
    %1376 = vmatprep.subr.mxu0 0.0
    %1377 = vmatpush1.msra.mxu0 0.0
    %1378 = vmatprep.subr.mxu0 0.0
    %1379 = vmatpush1.msra.mxu0 0.0
    %1380 = vmatprep.subr.mxu0 0.0
    %1381 = vmatpush1.msra.mxu0 0.0
    %1382 = vmatprep.subr.mxu0 0.0
    %1383 = vmatpush1.msra.mxu0 0.0
    %1384 = vmatprep.subr.mxu0 0.0
    %1385 = vmatpush1.msra.mxu0 0.0
    %1386 = vmatprep.subr.mxu0 0.0
    %1387 = vmatpush1.msra.mxu0 0.0
    %1388 = vmatprep.subr.mxu0 0.0
    %1389 = vmatpush1.msra.mxu0 0.0
    %1390 = vmatprep.subr.mxu0 0.0
    %1391 = vmatpush1.msra.mxu0 0.0
    %1392 = vmatprep.subr.mxu0 0.0
    %1393 = vmatpush1.msra.mxu0 0.0
    %1394 = vmatprep.subr.mxu0 0.0
    %1395 = vmatpush1.msra.mxu0 0.0
    %1396 = vmatprep.subr.mxu0 0.0
    %1397 = vmatpush1.msra.mxu0 0.0
    %1398 = vmatprep.subr.mxu0 0.0
    %1399 = vmatpush1.msra.mxu0 0.0
    %1400 = vmatprep.subr.mxu0 0.0
    %1401 = vmatpush1.msra.mxu0 0.0
    %1402 = vmatprep.mubr.f32.mxu0 0.0
    %1403 = vmatmul.mubr.f32.gmra.mrb[0].mxu0 %v1321
    %v1404 = vpop.f32.mrb[0].mxu0
    %v1405 = vadd.f32 0.0, %v1404
    %v1406 = vpop.f32.mrb[0].mxu0
    %1407 = vmatprep.mubr.f32.mxu0 0.0
    %1408 = vmatmul.mubr.f32.gmra.mrb[0].mxu0 %v1324
    %v1409 = vpop.f32.mrb[0].mxu0
    %v1410 = vadd.f32 0.0, %v1409
    %v1411 = vpop.f32.mrb[0].mxu0
    %1412 = vmatprep.mubr.f32.mxu0 0.0
    %1413 = vmatmul.mubr.f32.gmra.mrb[0].mxu0 %v1327
    %v1414 = vpop.f32.mrb[0].mxu0
    %v1415 = vadd.f32 0.0, %v1414
    %v1416 = vpop.f32.mrb[0].mxu0
    %1417 = vmatprep.mubr.f32.mxu0 0.0
    %1418 = vmatmul.mubr.f32.gmra.mrb[0].mxu0 %v1330
    %v1419 = vpop.f32.mrb[0].mxu0
    %v1420 = vadd.f32 0.0, %v1419
    %v1421 = vpop.f32.mrb[0].mxu0
    %1422 = vmatprep.mubr.f32.mxu0 0.0
    %1423 = vmatmul.mubr.f32.gmra.mrb[0].mxu0 %v1333
    %v1424 = vpop.f32.mrb[0].mxu0
    %v1425 = vadd.f32 0.0, %v1424
    %v1426 = vpop.f32.mrb[0].mxu0
    %1427 = vmatprep.mubr.f32.mxu0 0.0
    %1428 = vmatmul.mubr.f32.gmra.mrb[0].mxu0 %v1336
    %v1429 = vpop.f32.mrb[0].mxu0
    %v1430 = vadd.f32 0.0, %v1429
    %v1431 = vpop.f32.mrb[0].mxu0
    %1432 = vdwg.mxu0
    %v1433 = vmul.f32 %v1405, 0.35355338
    %v1434 = vmul.f32 %v1410, 0.35355338
    %v1435 = vmul.f32 %v1415, 0.35355338
    %v1436 = vmul.f32 %v1420, 0.35355338
    %v1437 = vmul.f32 %v1425, 0.35355338
    %v1438 = vmul.f32 %v1430, 0.35355338
    %v1439 = vsub.f32 0.0, %v1433
    %v1440 = vsub.f32 0.0, %v1434
    %v1441 = vsub.f32 0.0, %v1435
    %v1442 = vsub.f32 0.0, %v1436
    %v1443 = vsub.f32 0.0, %v1437
    %v1444 = vsub.f32 0.0, %v1438
    %v1445 = vmul.f32 %v1439, 1.442695
    %v1446 = vpow.pop %v1445
    %v1447 = vmul.f32 %v1440, 1.442695
    %v1448 = vpow.pop %v1447
    %v1449 = vmul.f32 %v1441, 1.442695
    %v1450 = vpow.pop %v1449
    %v1451 = vmul.f32 %v1442, 1.442695
    %v1452 = vpow.pop %v1451
    %v1453 = vmul.f32 %v1443, 1.442695
    %v1454 = vpow.pop %v1453
    %v1455 = vmul.f32 %v1444, 1.442695
    %v1456 = vpow.pop %v1455
    %v1457 = vadd.f32 %v1446, 1.0
    %v1458 = vadd.f32 %v1448, 1.0
    %v1459 = vadd.f32 %v1450, 1.0
    %v1460 = vadd.f32 %v1452, 1.0
    %v1461 = vadd.f32 %v1454, 1.0
    %v1462 = vadd.f32 %v1456, 1.0
    %v1463 = vrcp.pop %v1457
    %v1464 = vmul.f32 1.0, %v1463
    %v1465 = vrcp.pop %v1458
    %v1466 = vmul.f32 1.0, %v1465
    %v1467 = vrcp.pop %v1459
    %v1468 = vmul.f32 1.0, %v1467
    %v1469 = vrcp.pop %v1460
    %v1470 = vmul.f32 1.0, %v1469
    %v1471 = vrcp.pop %v1461
    %v1472 = vmul.f32 1.0, %v1471
    %v1473 = vrcp.pop %v1462
    %v1474 = vmul.f32 1.0, %v1473
    %v1476 = vsel %vm467, %v1464, 0
    %v1479 = vsel %vm467, %v1466, 0
    %v1482 = vsel %vm467, %v1468, 0
    %v1485 = vsel %vm467, %v1470, 0
    %v1488 = vsel %vm467, %v1472, 0
    %v1491 = vsel %vm467, %v1474, 0
    %1493 = vmatprep.subr.mxu0 0.0
    %1494 = vmatpush1.msra.mxu0 %v488
    %1495 = vmatprep.subr.mxu0 0.0
    %1496 = vmatpush1.msra.mxu0 0.0
    %1497 = vmatprep.subr.mxu0 0.0
    %1498 = vmatpush1.msra.mxu0 0.0
    %1499 = vmatprep.subr.mxu0 0.0
    %1500 = vmatpush1.msra.mxu0 0.0
    %1501 = vmatprep.subr.mxu0 0.0
    %1502 = vmatpush1.msra.mxu0 0.0
    %1503 = vmatprep.subr.mxu0 0.0
    %1504 = vmatpush1.msra.mxu0 0.0
    %1505 = vmatprep.subr.mxu0 0.0
    %1506 = vmatpush1.msra.mxu0 0.0
    %1507 = vmatprep.subr.mxu0 0.0
    %1508 = vmatpush1.msra.mxu0 0.0
    %1509 = vmatprep.subr.mxu0 0.0
    %1510 = vmatpush1.msra.mxu0 0.0
    %1511 = vmatprep.subr.mxu0 0.0
    %1512 = vmatpush1.msra.mxu0 0.0
    %1513 = vmatprep.subr.mxu0 0.0
    %1514 = vmatpush1.msra.mxu0 0.0
    %1515 = vmatprep.subr.mxu0 0.0
    %1516 = vmatpush1.msra.mxu0 0.0
    %1517 = vmatprep.subr.mxu0 0.0
    %1518 = vmatpush1.msra.mxu0 0.0
    %1519 = vmatprep.subr.mxu0 0.0
    %1520 = vmatpush1.msra.mxu0 0.0
    %1521 = vmatprep.subr.mxu0 0.0
    %1522 = vmatpush1.msra.mxu0 0.0
    %1523 = vmatprep.subr.mxu0 0.0
    %1524 = vmatpush1.msra.mxu0 0.0
    %1525 = vmatprep.subr.mxu0 0.0
    %1526 = vmatpush1.msra.mxu0 0.0
    %1527 = vmatprep.subr.mxu0 0.0
    %1528 = vmatpush1.msra.mxu0 0.0
    %1529 = vmatprep.subr.mxu0 0.0
    %1530 = vmatpush1.msra.mxu0 0.0
    %1531 = vmatprep.subr.mxu0 0.0
    %1532 = vmatpush1.msra.mxu0 0.0
    %1533 = vmatprep.subr.mxu0 0.0
    %1534 = vmatpush1.msra.mxu0 0.0
    %1535 = vmatprep.subr.mxu0 0.0
    %1536 = vmatpush1.msra.mxu0 0.0
    %1537 = vmatprep.subr.mxu0 0.0
    %1538 = vmatpush1.msra.mxu0 0.0
    %1539 = vmatprep.subr.mxu0 0.0
    %1540 = vmatpush1.msra.mxu0 0.0
    %1541 = vmatprep.subr.mxu0 0.0
    %1542 = vmatpush1.msra.mxu0 0.0
    %1543 = vmatprep.subr.mxu0 0.0
    %1544 = vmatpush1.msra.mxu0 0.0
    %1545 = vmatprep.subr.mxu0 0.0
    %1546 = vmatpush1.msra.mxu0 0.0
    %1547 = vmatprep.subr.mxu0 0.0
    %1548 = vmatpush1.msra.mxu0 0.0
    %1549 = vmatprep.subr.mxu0 0.0
    %1550 = vmatpush1.msra.mxu0 0.0
    %1551 = vmatprep.subr.mxu0 0.0
    %1552 = vmatpush1.msra.mxu0 0.0
    %1553 = vmatprep.subr.mxu0 0.0
    %1554 = vmatpush1.msra.mxu0 0.0
    %1555 = vmatprep.subr.mxu0 0.0
    %1556 = vmatpush1.msra.mxu0 0.0
    %1557 = vmatprep.mubr.f32.mxu0 0.0
    %1558 = vmatmul.mubr.f32.gmra.mrb[0].mxu0 %v1476
    %v1559 = vpop.f32.mrb[0].mxu0
    %v1560 = vadd.f32 0.0, %v1559
    %v1561 = vpop.f32.mrb[0].mxu0
    %1562 = vmatprep.mubr.f32.mxu0 0.0
    %1563 = vmatmul.mubr.f32.gmra.mrb[0].mxu0 %v1479
    %v1564 = vpop.f32.mrb[0].mxu0
    %v1565 = vadd.f32 0.0, %v1564
    %v1566 = vpop.f32.mrb[0].mxu0
    %1567 = vmatprep.mubr.f32.mxu0 0.0
    %1568 = vmatmul.mubr.f32.gmra.mrb[0].mxu0 %v1482
    %v1569 = vpop.f32.mrb[0].mxu0
    %v1570 = vadd.f32 0.0, %v1569
    %v1571 = vpop.f32.mrb[0].mxu0
    %1572 = vmatprep.mubr.f32.mxu0 0.0
    %1573 = vmatmul.mubr.f32.gmra.mrb[0].mxu0 %v1485
    %v1574 = vpop.f32.mrb[0].mxu0
    %v1575 = vadd.f32 0.0, %v1574
    %v1576 = vpop.f32.mrb[0].mxu0
    %1577 = vmatprep.mubr.f32.mxu0 0.0
    %1578 = vmatmul.mubr.f32.gmra.mrb[0].mxu0 %v1488
    %v1579 = vpop.f32.mrb[0].mxu0
    %v1580 = vadd.f32 0.0, %v1579
    %v1581 = vpop.f32.mrb[0].mxu0
    %1582 = vmatprep.mubr.f32.mxu0 0.0
    %1583 = vmatmul.mubr.f32.gmra.mrb[0].mxu0 %v1491
    %v1584 = vpop.f32.mrb[0].mxu0
    %v1585 = vadd.f32 0.0, %v1584
    %v1586 = vpop.f32.mrb[0].mxu0
    %1587 = vdwg.mxu0
    %1588 = vrot.lane.b32.xlu0 %v1284, 64
    %v1589 = vpop.permute.xlu0 %1588
    %1590 = vrot.lane.b32.xlu0 %v1285, 64
    %v1591 = vpop.permute.xlu0 %1590
    %1592 = vrot.lane.b32.xlu0 %v1286, 64
    %v1593 = vpop.permute.xlu0 %1592
    %1594 = vrot.lane.b32.xlu0 %v1287, 64
    %v1595 = vpop.permute.xlu0 %1594
    %1596 = vrot.lane.b32.xlu0 %v1288, 64
    %v1597 = vpop.permute.xlu0 %1596
    %1598 = vrot.lane.b32.xlu0 %v1289, 64
    %v1599 = vpop.permute.xlu0 %1598
    %v1606 = vmul.f32 %v1560, %v1589
    %v1607 = vmul.f32 %v1565, %v1591
    %v1608 = vmul.f32 %v1570, %v1593
    %v1609 = vmul.f32 %v1575, %v1595
    %v1610 = vmul.f32 %v1580, %v1597
    %v1611 = vmul.f32 %v1585, %v1599
    %1618 = vrot.lane.b32.xlu0 %v1606, 64
    %v1619 = vpop.permute.xlu0 %1618
    %1620 = vrot.lane.b32.xlu0 %v1607, 64
    %v1621 = vpop.permute.xlu0 %1620
    %1622 = vrot.lane.b32.xlu0 %v1608, 64
    %v1623 = vpop.permute.xlu0 %1622
    %1624 = vrot.lane.b32.xlu0 %v1609, 64
    %v1625 = vpop.permute.xlu0 %1624
    %1626 = vrot.lane.b32.xlu0 %v1610, 64
    %v1627 = vpop.permute.xlu0 %1626
    %1628 = vrot.lane.b32.xlu0 %v1611, 64
    %v1629 = vpop.permute.xlu0 %1628
    %v1636 = vadd.f32 %v1273, %v1619
    %v1637 = vadd.f32 %v1278, %v1621
    %v1638 = vadd.f32 %v1281, %v1623
    %v1639 = vadd.f32 %v1262, %v1625
    %v1640 = vadd.f32 %v1265, %v1627
    %v1641 = vadd.f32 %v1270, %v1629
    %s1642 = scalar_lea.vmem %s5, 16
    %v1643 = vld [vmem:[%s1642] sm:$0xf]
    %v1644 = vld [vmem:[%s1642 + $0x4] sm:$0xf]
    %v1645 = vld [vmem:[%s1642 + $0x8] sm:$0xf]
    %v1646 = vld [vmem:[%s1642 + $0xc] sm:$0xf]
    %v1647 = vpack.c.bf16 %v1637, %v1636
    %v1648 = vpack.c.bf16 %v1639, %v1638
    %v1649 = vpack.c.bf16 %v1641, %v1640
    %s1650 = scalar_lea.vmem %s6, 1
    %v1651 = vld [vmem:[%s1650] sm:$0x1]
    %v1653 = vlaneseq
    %v1654 = vshrl.u32 %v1653, 7
    %v1655 = vsub.s32 0, %v1654
    %v1656 = vrot.slane %v1651, %v1655
    %1661 = vrot.lane.b32.xlu0 %v1647, 64
    %v1662 = vpop.permute.xlu0 %1661
    %1663 = vrot.lane.b32.xlu0 %v1648, 64
    %v1664 = vpop.permute.xlu0 %1663
    %1665 = vrot.lane.b32.xlu0 %v1649, 64
    %v1666 = vpop.permute.xlu0 %1665
    %v1671 = vunpack.c.l.b16 %v1643
    %v1672 = vunpack.c.l.b16 %v1644
    %v1673 = vunpack.c.l.b16 %v1645
    %v1674 = vunpack.c.l.b16 %v1646
    %v1675 = vpack.c.b16 %v1672, %v1671
    %v1676 = vpack.c.b16 %v1674, %v1673
    %v1680 = vsel %vm209, %v1662, 0
    %v1683 = vsel %vm209, %v1664, 0
    %v1686 = vsel %vm209, %v1666, 0
    %1688 = vmatprep.subr.bf16.mxu0 0
    %1689 = vmatpush1.bf16.msra.mxu0 %v1675
    %1690 = vmatprep.subr.bf16.mxu0 0
    %1691 = vmatpush1.bf16.msra.mxu0 %v1676
    %1692 = vmatprep.subr.bf16.mxu0 0
    %1693 = vmatpush1.bf16.msra.mxu0 0
    %1694 = vmatprep.subr.bf16.mxu0 0
    %1695 = vmatpush1.bf16.msra.mxu0 0
    %1696 = vmatprep.subr.bf16.mxu0 0
    %1697 = vmatpush1.bf16.msra.mxu0 0
    %1698 = vmatprep.subr.bf16.mxu0 0
    %1699 = vmatpush1.bf16.msra.mxu0 0
    %1700 = vmatprep.subr.bf16.mxu0 0
    %1701 = vmatpush1.bf16.msra.mxu0 0
    %1702 = vmatprep.subr.bf16.mxu0 0
    %1703 = vmatpush1.bf16.msra.mxu0 0
    %1704 = vmatprep.subr.bf16.mxu0 0
    %1705 = vmatpush1.bf16.msra.mxu0 0
    %1706 = vmatprep.subr.bf16.mxu0 0
    %1707 = vmatpush1.bf16.msra.mxu0 0
    %1708 = vmatprep.subr.bf16.mxu0 0
    %1709 = vmatpush1.bf16.msra.mxu0 0
    %1710 = vmatprep.subr.bf16.mxu0 0
    %1711 = vmatpush1.bf16.msra.mxu0 0
    %1712 = vmatprep.subr.bf16.mxu0 0
    %1713 = vmatpush1.bf16.msra.mxu0 0
    %1714 = vmatprep.subr.bf16.mxu0 0
    %1715 = vmatpush1.bf16.msra.mxu0 0
    %1716 = vmatprep.subr.bf16.mxu0 0
    %1717 = vmatpush1.bf16.msra.mxu0 0
    %1718 = vmatprep.subr.bf16.mxu0 0
    %1719 = vmatpush1.bf16.msra.mxu0 0
    %1720 = vmatprep.mubr.bf16.mxu0 0
    %1721 = vmatmul.mubr.bf16.gmra.mrb[0].mxu0 %v1680
    %v1722 = vpop.f32.mrb[0].mxu0
    %v1723 = vadd.f32 %v1656, %v1722
    %v1724 = vpop.f32.mrb[0].mxu0
    %v1725 = vpop.f32.mrb[0].mxu0
    %v1726 = vadd.f32 %v1656, %v1725
    %v1727 = vpop.f32.mrb[0].mxu0
    %1728 = vmatprep.mubr.bf16.mxu0 0
    %1729 = vmatmul.mubr.bf16.gmra.mrb[0].mxu0 %v1683
    %v1730 = vpop.f32.mrb[0].mxu0
    %v1731 = vadd.f32 %v1656, %v1730
    %v1732 = vpop.f32.mrb[0].mxu0
    %v1733 = vpop.f32.mrb[0].mxu0
    %v1734 = vadd.f32 %v1656, %v1733
    %v1735 = vpop.f32.mrb[0].mxu0
    %1736 = vmatprep.mubr.bf16.mxu0 0
    %1737 = vmatmul.mubr.bf16.gmra.mrb[0].mxu0 %v1686
    %v1738 = vpop.f32.mrb[0].mxu0
    %v1739 = vadd.f32 %v1656, %v1738
    %v1740 = vpop.f32.mrb[0].mxu0
    %v1741 = vpop.f32.mrb[0].mxu0
    %v1742 = vadd.f32 %v1656, %v1741
    %v1743 = vpop.f32.mrb[0].mxu0
    %1744 = vdwg.mxu0
    %v1745 = vadd.f32 %v1184, %v1723
    %v1746 = vadd.f32 %v1185, %v1726
    %v1747 = vadd.f32 %v1186, %v1731
    %v1748 = vadd.f32 %v1187, %v1734
    %v1749 = vadd.f32 %v1188, %v1739
    %v1750 = vadd.f32 %v1189, %v1742
    %s1751 = scalar_lea.vmem %s7, 1
    %v1752 = vld [vmem:[%s1751] sm:$0x1]
    %s1753 = scalar_lea.vmem %s8, 1
    %v1754 = vld [vmem:[%s1753] sm:$0x1]
    %v1755 = vsel %vm209, %v1745, 0.0
    %1756 = vadd.xlane.f32.xlu0 %v1755
    %v1757 = vpop.xlane.xlu0 %1756
    %v1758 = vsel %vm209, %v1746, 0.0
    %1759 = vadd.xlane.f32.xlu0 %v1758
    %v1760 = vpop.xlane.xlu0 %1759
    %v1761 = vsel %vm209, %v1747, 0.0
    %1762 = vadd.xlane.f32.xlu0 %v1761
    %v1763 = vpop.xlane.xlu0 %1762
    %v1764 = vsel %vm209, %v1748, 0.0
    %1765 = vadd.xlane.f32.xlu0 %v1764
    %v1766 = vpop.xlane.xlu0 %1765
    %v1767 = vsel %vm209, %v1749, 0.0
    %1768 = vadd.xlane.f32.xlu0 %v1767
    %v1769 = vpop.xlane.xlu0 %1768
    %v1770 = vsel %vm209, %v1750, 0.0
    %1771 = vadd.xlane.f32.xlu0 %v1770
    %v1772 = vpop.xlane.xlu0 %1771
    %v1773 = vmul.f32 %v1757, %v766
    %v1774 = vmul.f32 %v1760, %v766
    %v1775 = vmul.f32 %v1763, %v766
    %v1776 = vmul.f32 %v1766, %v766
    %v1777 = vmul.f32 %v1769, %v766
    %v1778 = vmul.f32 %v1772, %v766
    %v1779 = vsub.f32 %v1745, %v1773
    %v1780 = vsub.f32 %v1746, %v1774
    %v1781 = vsub.f32 %v1747, %v1775
    %v1782 = vsub.f32 %v1748, %v1776
    %v1783 = vsub.f32 %v1749, %v1777
    %v1784 = vsub.f32 %v1750, %v1778
    %v1785 = vmul.f32 %v1779, %v1779
    %v1786 = vmul.f32 %v1780, %v1780
    %v1787 = vmul.f32 %v1781, %v1781
    %v1788 = vmul.f32 %v1782, %v1782
    %v1789 = vmul.f32 %v1783, %v1783
    %v1790 = vmul.f32 %v1784, %v1784
    %v1791 = vsel %vm209, %v1785, 0.0
    %1792 = vadd.xlane.f32.xlu0 %v1791
    %v1793 = vpop.xlane.xlu0 %1792
    %v1794 = vsel %vm209, %v1786, 0.0
    %1795 = vadd.xlane.f32.xlu0 %v1794
    %v1796 = vpop.xlane.xlu0 %1795
    %v1797 = vsel %vm209, %v1787, 0.0
    %1798 = vadd.xlane.f32.xlu0 %v1797
    %v1799 = vpop.xlane.xlu0 %1798
    %v1800 = vsel %vm209, %v1788, 0.0
    %1801 = vadd.xlane.f32.xlu0 %v1800
    %v1802 = vpop.xlane.xlu0 %1801
    %v1803 = vsel %vm209, %v1789, 0.0
    %1804 = vadd.xlane.f32.xlu0 %v1803
    %v1805 = vpop.xlane.xlu0 %1804
    %v1806 = vsel %vm209, %v1790, 0.0
    %1807 = vadd.xlane.f32.xlu0 %v1806
    %v1808 = vpop.xlane.xlu0 %1807
    %v1809 = vmul.f32 %v1793, %v766
    %v1810 = vmul.f32 %v1796, %v766
    %v1811 = vmul.f32 %v1799, %v766
    %v1812 = vmul.f32 %v1802, %v766
    %v1813 = vmul.f32 %v1805, %v766
    %v1814 = vmul.f32 %v1808, %v766
    %v1815 = vadd.f32 %v1809, 1e-05
    %v1816 = vadd.f32 %v1810, 1e-05
    %v1817 = vadd.f32 %v1811, 1e-05
    %v1818 = vadd.f32 %v1812, 1e-05
    %v1819 = vadd.f32 %v1813, 1e-05
    %v1820 = vadd.f32 %v1814, 1e-05
    %v1821 = vrsqrt.pop %v1815
    %v1822 = vrsqrt.pop %v1816
    %v1823 = vrsqrt.pop %v1817
    %v1824 = vrsqrt.pop %v1818
    %v1825 = vrsqrt.pop %v1819
    %v1826 = vrsqrt.pop %v1820
    %v1827 = vmul.f32 %v1779, %v1821
    %v1828 = vmul.f32 %v1780, %v1822
    %v1829 = vmul.f32 %v1781, %v1823
    %v1830 = vmul.f32 %v1782, %v1824
    %v1831 = vmul.f32 %v1783, %v1825
    %v1832 = vmul.f32 %v1784, %v1826
    %v1834 = vlaneseq
    %v1835 = vshrl.u32 %v1834, 7
    %v1836 = vsub.s32 0, %v1835
    %v1837 = vrot.slane %v1752, %v1836
    %v1839 = vmul.f32 %v1827, %v1837
    %v1840 = vmul.f32 %v1828, %v1837
    %v1841 = vmul.f32 %v1829, %v1837
    %v1842 = vmul.f32 %v1830, %v1837
    %v1843 = vmul.f32 %v1831, %v1837
    %v1844 = vmul.f32 %v1832, %v1837
    %v1846 = vlaneseq
    %v1847 = vshrl.u32 %v1846, 7
    %v1848 = vsub.s32 0, %v1847
    %v1849 = vrot.slane %v1754, %v1848
    %v1851 = vadd.f32 %v1839, %v1849
    %v1852 = vadd.f32 %v1840, %v1849
    %v1853 = vadd.f32 %v1841, %v1849
    %v1854 = vadd.f32 %v1842, %v1849
    %v1855 = vadd.f32 %v1843, %v1849
    %v1856 = vadd.f32 %v1844, %v1849
    %s1857 = scalar_lea.vmem %s9, 16
    %v1858 = vld [vmem:[%s1857] sm:$0xf]
    %v1859 = vld [vmem:[%s1857 + $0x4] sm:$0xf]
    %v1860 = vld [vmem:[%s1857 + $0x8] sm:$0xf]
    %v1861 = vld [vmem:[%s1857 + $0xc] sm:$0xf]
    %v1862 = vpack.c.bf16 %v1852, %v1851
    %v1863 = vpack.c.bf16 %v1854, %v1853
    %v1864 = vpack.c.bf16 %v1856, %v1855
    %s1865 = scalar_lea.vmem %s10, 1
    %v1866 = vld [vmem:[%s1865] sm:$0x1]
    %v1868 = vlaneseq
    %v1869 = vshrl.u32 %v1868, 7
    %v1870 = vsub.s32 0, %v1869
    %v1871 = vrot.slane %v1866, %v1870
    %v1877 = vunpack.c.l.b16 %v1858
    %v1878 = vunpack.c.l.b16 %v1859
    %v1879 = vunpack.c.l.b16 %v1860
    %v1880 = vunpack.c.l.b16 %v1861
    %v1881 = vpack.c.b16 %v1878, %v1877
    %v1882 = vpack.c.b16 %v1880, %v1879
    %v1886 = vsel %vm209, %v1862, 0
    %v1889 = vsel %vm209, %v1863, 0
    %v1892 = vsel %vm209, %v1864, 0
    %1894 = vmatprep.subr.bf16.mxu0 0
    %1895 = vmatpush1.bf16.msra.mxu0 %v1881
    %1896 = vmatprep.subr.bf16.mxu0 0
    %1897 = vmatpush1.bf16.msra.mxu0 %v1882
    %1898 = vmatprep.subr.bf16.mxu0 0
    %1899 = vmatpush1.bf16.msra.mxu0 0
    %1900 = vmatprep.subr.bf16.mxu0 0
    %1901 = vmatpush1.bf16.msra.mxu0 0
    %1902 = vmatprep.subr.bf16.mxu0 0
    %1903 = vmatpush1.bf16.msra.mxu0 0
    %1904 = vmatprep.subr.bf16.mxu0 0
    %1905 = vmatpush1.bf16.msra.mxu0 0
    %1906 = vmatprep.subr.bf16.mxu0 0
    %1907 = vmatpush1.bf16.msra.mxu0 0
    %1908 = vmatprep.subr.bf16.mxu0 0
    %1909 = vmatpush1.bf16.msra.mxu0 0
    %1910 = vmatprep.subr.bf16.mxu0 0
    %1911 = vmatpush1.bf16.msra.mxu0 0
    %1912 = vmatprep.subr.bf16.mxu0 0
    %1913 = vmatpush1.bf16.msra.mxu0 0
    %1914 = vmatprep.subr.bf16.mxu0 0
    %1915 = vmatpush1.bf16.msra.mxu0 0
    %1916 = vmatprep.subr.bf16.mxu0 0
    %1917 = vmatpush1.bf16.msra.mxu0 0
    %1918 = vmatprep.subr.bf16.mxu0 0
    %1919 = vmatpush1.bf16.msra.mxu0 0
    %1920 = vmatprep.subr.bf16.mxu0 0
    %1921 = vmatpush1.bf16.msra.mxu0 0
    %1922 = vmatprep.subr.bf16.mxu0 0
    %1923 = vmatpush1.bf16.msra.mxu0 0
    %1924 = vmatprep.subr.bf16.mxu0 0
    %1925 = vmatpush1.bf16.msra.mxu0 0
    %1926 = vmatprep.mubr.bf16.mxu0 0
    %1927 = vmatmul.mubr.bf16.gmra.mrb[0].mxu0 %v1886
    %v1928 = vpop.f32.mrb[0].mxu0
    %v1929 = vadd.f32 %v1871, %v1928
    %v1930 = vpop.f32.mrb[0].mxu0
    %v1931 = vpop.f32.mrb[0].mxu0
    %v1932 = vadd.f32 %v1871, %v1931
    %v1933 = vpop.f32.mrb[0].mxu0
    %1934 = vmatprep.mubr.bf16.mxu0 0
    %1935 = vmatmul.mubr.bf16.gmra.mrb[0].mxu0 %v1889
    %v1936 = vpop.f32.mrb[0].mxu0
    %v1937 = vadd.f32 %v1871, %v1936
    %v1938 = vpop.f32.mrb[0].mxu0
    %v1939 = vpop.f32.mrb[0].mxu0
    %v1940 = vadd.f32 %v1871, %v1939
    %v1941 = vpop.f32.mrb[0].mxu0
    %1942 = vmatprep.mubr.bf16.mxu0 0
    %1943 = vmatmul.mubr.bf16.gmra.mrb[0].mxu0 %v1892
    %v1944 = vpop.f32.mrb[0].mxu0
    %v1945 = vadd.f32 %v1871, %v1944
    %v1946 = vpop.f32.mrb[0].mxu0
    %v1947 = vpop.f32.mrb[0].mxu0
    %v1948 = vadd.f32 %v1871, %v1947
    %v1949 = vpop.f32.mrb[0].mxu0
    %1950 = vdwg.mxu0
    %v1951 = vmax.f32 %v1929, 0.0
    %v1952 = vmax.f32 %v1932, 0.0
    %v1953 = vmax.f32 %v1937, 0.0
    %v1954 = vmax.f32 %v1940, 0.0
    %v1955 = vmax.f32 %v1945, 0.0
    %v1956 = vmax.f32 %v1948, 0.0
    %s1957 = scalar_lea.vmem %s11, 64
    %v1958 = vld [vmem:[%s1957] sm:$0xf]
    %v1959 = vld [vmem:[%s1957 + $0x4] sm:$0xf]
    %v1960 = vld [vmem:[%s1957 + $0x8] sm:$0xf]
    %v1961 = vld [vmem:[%s1957 + $0xc] sm:$0xf]
    %v1962 = vld [vmem:[%s1957 + $0x10] sm:$0xf]
    %v1963 = vld [vmem:[%s1957 + $0x14] sm:$0xf]
    %v1964 = vld [vmem:[%s1957 + $0x18] sm:$0xf]
    %v1965 = vld [vmem:[%s1957 + $0x1c] sm:$0xf]
    %v1966 = vld [vmem:[%s1957 + $0x20] sm:$0xf]
    %v1967 = vld [vmem:[%s1957 + $0x24] sm:$0xf]
    %v1968 = vld [vmem:[%s1957 + $0x28] sm:$0xf]
    %v1969 = vld [vmem:[%s1957 + $0x2c] sm:$0xf]
    %v1970 = vld [vmem:[%s1957 + $0x30] sm:$0xf]
    %v1971 = vld [vmem:[%s1957 + $0x34] sm:$0xf]
    %v1972 = vld [vmem:[%s1957 + $0x38] sm:$0xf]
    %v1973 = vld [vmem:[%s1957 + $0x3c] sm:$0xf]
    %v1974 = vpack.c.bf16 %v1952, %v1951
    %v1975 = vpack.c.bf16 %v1954, %v1953
    %v1976 = vpack.c.bf16 %v1956, %v1955
    %s1977 = scalar_lea.vmem %s12, 1
    %v1978 = vld [vmem:[%s1977] sm:$0x1]
    %v1980 = vlaneseq
    %v1981 = vshrl.u32 %v1980, 7
    %v1982 = vsub.s32 0, %v1981
    %v1983 = vrot.slane %v1978, %v1982
    %v2001 = vunpack.c.l.b16 %v1958
    %v2002 = vunpack.c.l.b16 %v1959
    %v2003 = vunpack.c.l.b16 %v1960
    %v2004 = vunpack.c.l.b16 %v1961
    %v2005 = vunpack.c.l.b16 %v1962
    %v2006 = vunpack.c.l.b16 %v1963
    %v2007 = vunpack.c.l.b16 %v1964
    %v2008 = vunpack.c.l.b16 %v1965
    %v2009 = vunpack.c.l.b16 %v1966
    %v2010 = vunpack.c.l.b16 %v1967
    %v2011 = vunpack.c.l.b16 %v1968
    %v2012 = vunpack.c.l.b16 %v1969
    %v2013 = vunpack.c.l.b16 %v1970
    %v2014 = vunpack.c.l.b16 %v1971
    %v2015 = vunpack.c.l.b16 %v1972
    %v2016 = vunpack.c.l.b16 %v1973
    %v2017 = vpack.c.b16 %v2002, %v2001
    %v2018 = vpack.c.b16 %v2004, %v2003
    %v2019 = vpack.c.b16 %v2006, %v2005
    %v2020 = vpack.c.b16 %v2008, %v2007
    %v2021 = vpack.c.b16 %v2010, %v2009
    %v2022 = vpack.c.b16 %v2012, %v2011
    %v2023 = vpack.c.b16 %v2014, %v2013
    %v2024 = vpack.c.b16 %v2016, %v2015
    %2033 = vmatprep.subr.bf16.mxu0 0
    %2034 = vmatpush1.bf16.msra.mxu0 %v2017
    %2035 = vmatprep.subr.bf16.mxu0 0
    %2036 = vmatpush1.bf16.msra.mxu0 %v2018
    %2037 = vmatprep.subr.bf16.mxu0 0
    %2038 = vmatpush1.bf16.msra.mxu0 %v2019
    %2039 = vmatprep.subr.bf16.mxu0 0
    %2040 = vmatpush1.bf16.msra.mxu0 %v2020
    %2041 = vmatprep.subr.bf16.mxu0 0
    %2042 = vmatpush1.bf16.msra.mxu0 %v2021
    %2043 = vmatprep.subr.bf16.mxu0 0
    %2044 = vmatpush1.bf16.msra.mxu0 %v2022
    %2045 = vmatprep.subr.bf16.mxu0 0
    %2046 = vmatpush1.bf16.msra.mxu0 %v2023
    %2047 = vmatprep.subr.bf16.mxu0 0
    %2048 = vmatpush1.bf16.msra.mxu0 %v2024
    %2049 = vmatprep.subr.bf16.mxu0 0
    %2050 = vmatpush1.bf16.msra.mxu0 0
    %2051 = vmatprep.subr.bf16.mxu0 0
    %2052 = vmatpush1.bf16.msra.mxu0 0
    %2053 = vmatprep.subr.bf16.mxu0 0
    %2054 = vmatpush1.bf16.msra.mxu0 0
    %2055 = vmatprep.subr.bf16.mxu0 0
    %2056 = vmatpush1.bf16.msra.mxu0 0
    %2057 = vmatprep.subr.bf16.mxu0 0
    %2058 = vmatpush1.bf16.msra.mxu0 0
    %2059 = vmatprep.subr.bf16.mxu0 0
    %2060 = vmatpush1.bf16.msra.mxu0 0
    %2061 = vmatprep.subr.bf16.mxu0 0
    %2062 = vmatpush1.bf16.msra.mxu0 0
    %2063 = vmatprep.subr.bf16.mxu0 0
    %2064 = vmatpush1.bf16.msra.mxu0 0
    %2065 = vmatprep.mubr.bf16.mxu0 0
    %2066 = vmatmul.mubr.bf16.gmra.mrb[0].mxu0 %v1974
    %v2067 = vpop.f32.mrb[0].mxu0
    %v2068 = vadd.f32 %v1983, %v2067
    %v2069 = vpop.f32.mrb[0].mxu0
    %v2070 = vpop.f32.mrb[0].mxu0
    %v2071 = vpop.f32.mrb[0].mxu0
    %2072 = vmatprep.mubr.bf16.mxu0 0
    %2073 = vmatmul.mubr.bf16.gmra.mrb[0].mxu0 %v1975
    %v2074 = vpop.f32.mrb[0].mxu0
    %v2075 = vpop.f32.mrb[0].mxu0
    %v2076 = vpop.f32.mrb[0].mxu0
    %v2077 = vadd.f32 %v1983, %v2076
    %v2078 = vpop.f32.mrb[0].mxu0
    %2079 = vmatprep.mubr.bf16.mxu0 0
    %2080 = vmatmul.mubr.bf16.gmra.mrb[0].mxu0 %v1976
    %v2081 = vpop.f32.mrb[0].mxu0
    %v2082 = vpop.f32.mrb[0].mxu0
    %v2083 = vpop.f32.mrb[0].mxu0
    %v2084 = vpop.f32.mrb[0].mxu0
    %2085 = vdwg.mxu0
    %v2086 = vadd.f32 %v1851, %v2068
    %v2087 = vadd.f32 %v1854, %v2077
    %s2088 = scalar_lea.vmem %s13, 1
    %v2089 = vld [vmem:[%s2088] sm:$0x1]
    %s2090 = scalar_lea.vmem %s14, 1
    %v2091 = vld [vmem:[%s2090] sm:$0x1]
    %v2092 = vsel %vm209, %v2086, 0.0
    %2093 = vadd.xlane.f32.xlu0 %v2092
    %v2094 = vpop.xlane.xlu0 %2093
    %v2095 = vsel %vm209, %v2087, 0.0
    %2096 = vadd.xlane.f32.xlu0 %v2095
    %v2097 = vpop.xlane.xlu0 %2096
    %v2098 = vmul.f32 %v2094, %v766
    %v2099 = vmul.f32 %v2097, %v766
    %v2100 = vsub.f32 %v2086, %v2098
    %v2101 = vsub.f32 %v2087, %v2099
    %v2102 = vmul.f32 %v2100, %v2100
    %v2103 = vmul.f32 %v2101, %v2101
    %v2104 = vsel %vm209, %v2102, 0.0
    %2105 = vadd.xlane.f32.xlu0 %v2104
    %v2106 = vpop.xlane.xlu0 %2105
    %v2107 = vsel %vm209, %v2103, 0.0
    %2108 = vadd.xlane.f32.xlu0 %v2107
    %v2109 = vpop.xlane.xlu0 %2108
    %v2110 = vmul.f32 %v2106, %v766
    %v2111 = vmul.f32 %v2109, %v766
    %v2112 = vadd.f32 %v2110, 1e-05
    %v2113 = vadd.f32 %v2111, 1e-05
    %v2114 = vrsqrt.pop %v2112
    %v2115 = vrsqrt.pop %v2113
    %v2116 = vmul.f32 %v2100, %v2114
    %v2117 = vmul.f32 %v2101, %v2115
    %v2119 = vlaneseq
    %v2120 = vshrl.u32 %v2119, 7
    %v2121 = vsub.s32 0, %v2120
    %v2122 = vrot.slane %v2089, %v2121
    %v2124 = vmul.f32 %v2116, %v2122
    %v2125 = vmul.f32 %v2117, %v2122
    %v2127 = vlaneseq
    %v2128 = vshrl.u32 %v2127, 7
    %v2129 = vsub.s32 0, %v2128
    %v2130 = vrot.slane %v2091, %v2129
    %v2132 = vadd.f32 %v2124, %v2130
    %v2133 = vadd.f32 %v2125, %v2130
    %v2135 = vrot.slane %v2133, 7
    %vm2137 = vcmask 1040384
    %v2138 = vsel %vm2137, %v2132, %v2135
    %v2139 = vld [vmem:[%s15] sm:$0x1]
    %v2140 = vld [vmem:[%s16] sm:$0x1]
    %vm2141 = vcmask 254976
    %v2142 = vsel %vm2141, %v2138, 0.0
    %2143 = vadd.xlane.f32.xlu0 %v2142
    %v2144 = vpop.xlane.xlu0 %2143
    %v2145 = vmul.f32 %v2144, %v766
    %v2146 = vsub.f32 %v2138, %v2145
    %v2147 = vmul.f32 %v2146, %v2146
    %v2148 = vsel %vm2141, %v2147, 0.0
    %2149 = vadd.xlane.f32.xlu0 %v2148
    %v2150 = vpop.xlane.xlu0 %2149
    %v2151 = vmul.f32 %v2150, %v766
    %v2152 = vadd.f32 %v2151, 1e-05
    %v2153 = vrsqrt.pop %v2152
    %v2154 = vmul.f32 %v2146, %v2153
    %v2156 = vlaneseq
    %v2157 = vshrl.u32 %v2156, 7
    %v2158 = vsub.s32 0, %v2157
    %v2159 = vrot.slane %v2139, %v2158
    %v2161 = vmul.f32 %v2154, %v2159
    %v2163 = vlaneseq
    %v2164 = vshrl.u32 %v2163, 7
    %v2165 = vsub.s32 0, %v2164
    %v2166 = vrot.slane %v2140, %v2165
    %v2168 = vadd.f32 %v2161, %v2166
    %2169 = vst.msk [vmem:[#allocation2] sm:$0x3] %vm2141, %v2168
    // Predicated region
    $region78: #{manual_vit_forward.1} parent=1 // pred_check
      _
    $region79: #{manual_vit_forward.1} parent=1 // pred_check_branch
      %2171 = sbr.rel (0) target = $region81
    $region80: #{manual_vit_forward.1} parent=1 // pred_region
      %s2173 = ssub.s32 32, 32
      %2174 = vsyncadd [#allocation3], %s2173
      %s2176 = sshll.u32 [#allocation2], 4
      %s2177 = int_to_ptr.vmem [resolvable:$true] %s2176
      %2179 = dma.vmem_to_hbm [thread:$0]  %s2177, 32, %s19, [#allocation3]
    $region81: #{manual_vit_forward.1} parent=1 // pred_fallthru
      _
    // Predicated region
    $region82: #{manual_vit_forward.1} parent=1 // pred_check
      _
    $region83: #{manual_vit_forward.1} parent=1 // pred_check_branch
      %2181 = sbr.rel (0) target = $region85
    $region84: #{manual_vit_forward.1} parent=1 // pred_region
      %2182 = dma.done [#allocation3], 32
    $region85: #{manual_vit_forward.1} parent=1 // pred_fallthru
      _
    %2183 = vsyncpa [#allocation3], 1

</llo_original>
